<compile_context>
chip_gen: v6e
topology: v6e:2x2x1
jax: 0.10.0
libtpu: 0.0.40
codegen_flags: <defaults>
</compile_context>

<pallas_src>
from functools import partial

import numpy as np
import jax
import jax.numpy as jnp
from jax.experimental import pallas as pl
from jax.experimental.pallas import tpu as pltpu


# --------------------------------------------------------------------------- kernel
def _flow_kernel(perm_indices,
                 arm_ref, cond_ref,
                 w1c_ref, w1d_ref, b1_ref, w2_ref, b2_ref, w3_ref, b3_ref,
                 arm_out_ref, st_ref, ldj_ref):
    """All coupling units fused, feature-major layout (batch on lanes).

    arm_ref:  (D, Bt)   cond_ref: (C, Bt)
    w1c_ref:  (H, D/2)  w1d_ref:  (H, C)   b1_ref: (H, 1)
    w2_ref:   (H, H)    b2_ref:   (H, 1)
    w3_ref:   (D, H)    b3_ref:   (D, 1)
    arm_out_ref: (D, Bt)   st_ref: (L, D, Bt)   ldj_ref: (1, Bt)
    """
    D, bt = arm_ref.shape
    half = D // 2
    H = w2_ref.shape[0]
    num_layers = len(perm_indices)

    # Layer-invariant loads / broadcasts, hoisted out of the unrolled loop.
    w1c = w1c_ref[...]
    w2 = w2_ref[...]
    w3 = w3_ref[...]
    b2b = jnp.broadcast_to(b2_ref[...], (H, bt))
    b3b = jnp.broadcast_to(b3_ref[...], (D, bt))
    # conditional_input = cat(const_arm, conditions):  W1d @ cond + b1 is identical
    # for every layer -> compute once.
    cond_proj = (jnp.dot(w1d_ref[...], cond_ref[...],
                         preferred_element_type=jnp.float32)
                 + jnp.broadcast_to(b1_ref[...], (H, bt)))

    arm = arm_ref[...]                                       # (D, Bt)
    for l in range(num_layers):                              # static unroll (L small)
        const = arm[:half, :]                                # untouched half  (D/2, Bt)
        altered = arm[half:, :]                              # transformed half

        # Conditional_Net: Linear -> ReLU -> Linear -> ReLU -> Linear (concat-free)
        h = jnp.dot(w1c, const, preferred_element_type=jnp.float32) + cond_proj
        h = jnp.maximum(h, 0.0)
        h = jnp.dot(w2, h, preferred_element_type=jnp.float32) + b2b
        h = jnp.maximum(h, 0.0)
        st = jnp.dot(w3, h, preferred_element_type=jnp.float32) + b3b   # (D, Bt) = [s ; t]

        st_ref[l] = st                                       # lane-dense slab write
        s = st[:half, :]
        t = st[half:, :]

        if l == num_layers - 1:
            # Last layer's log_det_jac = sum(s) over features: sublane reduce (XLU),
            # emitted as a lane-dense (1, Bt) row.
            ldj_ref[...] = jnp.sum(s, axis=0, keepdims=True)

        new_altered = altered * jnp.exp(s) + t

        # Permute_Layer: static sublane shuffle of cat(const, new_altered); no MXU.
        idx = perm_indices[l]
        rows = []
        for j in idx:
            if j < half:
                rows.append(const[j:j + 1, :])
            else:
                rows.append(new_altered[j - half:j - half + 1, :])
        arm = jnp.concatenate(rows, axis=0)                  # (D, Bt)

    arm_out_ref[...] = arm


# ------------------------------------------------------------------------- wrappers
def flow_forward_fused(arm_t, cond_t, w1c_t, w1d_t, b1, w2_t, b2, w3_t, b3,
                       perm_indices, *, b_tile=None):
    """Single fused pallas_call over all coupling layers, batch tiled on lanes."""
    D, B = arm_t.shape
    C = cond_t.shape[0]
    H = w2_t.shape[0]
    L = len(perm_indices)
    half = D // 2

    if b_tile is None:
        # Multiple of 256 keeps MXU passes full on v6e/v7x (and 128 on v5e).
        b_tile = 1024 if B >= 2048 else 256
    # Always tile the batch; pad to a multiple of b_tile and guarantee >= 2 grid
    # steps so v7x's two TensorCores can both be used (harmless on v5e/v6e).
    num_tiles = max(2, pl.cdiv(B, b_tile))
    b_pad = num_tiles * b_tile
    if b_pad != B:
        arm_t = jnp.pad(arm_t, ((0, 0), (0, b_pad - B)))
        cond_t = jnp.pad(cond_t, ((0, 0), (0, b_pad - B)))

    batch_map2 = lambda i: (0, i)
    batch_map3 = lambda i: (0, 0, i)
    const2 = lambda i: (0, 0)

    in_specs = [
        pl.BlockSpec((D, b_tile), batch_map2),       # arm poses (feature-major)
        pl.BlockSpec((C, b_tile), batch_map2),       # conditions (cart poses)
        pl.BlockSpec((H, half), const2),             # w1c^T (const-arm half of w1)
        pl.BlockSpec((H, C), const2),                # w1d^T (condition half of w1)
        pl.BlockSpec((H, 1), const2),                # b1
        pl.BlockSpec((H, H), const2),                # w2^T
        pl.BlockSpec((H, 1), const2),                # b2
        pl.BlockSpec((D, H), const2),                # w3^T
        pl.BlockSpec((D, 1), const2),                # b3
    ]
    out_specs = (
        pl.BlockSpec((D, b_tile), batch_map2),       # final arm poses (D, B)
        pl.BlockSpec((L, D, b_tile), batch_map3),    # per-layer [s ; t] slab
        pl.BlockSpec((1, b_tile), batch_map2),       # last-layer log_det_jac
    )
    out_shapes = (
        jax.ShapeDtypeStruct((D, b_pad), jnp.float32),
        jax.ShapeDtypeStruct((L, D, b_pad), jnp.float32),
        jax.ShapeDtypeStruct((1, b_pad), jnp.float32),
    )
    kernel = partial(_flow_kernel, perm_indices)
    return pl.pallas_call(
        kernel,
        grid=(num_tiles,),
        in_specs=in_specs,
        out_specs=out_specs,
        out_shape=out_shapes,
        compiler_params=pltpu.CompilerParams(
            dimension_semantics=("parallel",)),      # shard batch across TCs (v7x)
    )(arm_t, cond_t, w1c_t, w1d_t, b1, w2_t, b2, w3_t, b3)


@partial(jax.jit, static_argnames=("perm_indices",))
def _normalizing_flow_forward_impl(arm_poses, cart_poses, params, perm_indices):
    (w1, b1), (w2, b2), (w3, b3) = params
    B, D = arm_poses.shape
    half = D // 2

    # Host-side layout plumbing: feature-major tensors, transposed / split weights.
    arm_t = arm_poses.astype(jnp.float32).T                  # (D, B)
    cond_t = cart_poses.astype(jnp.float32).T                # (C, B)
    w1c_t = w1[:half].T                                      # (H, D/2)
    w1d_t = w1[half:].T                                      # (H, C)
    b1_t = b1.reshape(-1, 1)                                 # (H, 1)
    w2_t = w2.T                                              # (H, H)
    b2_t = b2.reshape(-1, 1)
    w3_t = w3.T                                              # (D, H)
    b3_t = b3.reshape(-1, 1)

    arm_out_t, st, ldj = flow_forward_fused(
        arm_t, cond_t, w1c_t, w1d_t, b1_t, w2_t, b2_t, w3_t, b3_t, perm_indices)

    arm_out = arm_out_t[:, :B].T                             # (B, D)
    log_det_jac = ldj[0, :B]                                 # (B,)  (LAST layer only)
    s_all = jnp.transpose(st[:, :half, :B], (0, 2, 1))       # (L, B, D/2)
    t_all = jnp.transpose(st[:, half:, :B], (0, 2, 1))
    return arm_out, log_det_jac, s_all, t_all


def normalizing_flow_forward(arm_poses, cart_poses, params, perm_indices):
    """Normalizing_Flow_Net.forward.

    Returns (generated_arm_poses, last_log_det_jac, s_hist, t_hist).  Note: like the
    PyTorch module, only the LAST layer's log_det_jac is returned; per-layer values
    can be derived from s_hist.
    """
    perm_indices = tuple(tuple(int(j) for j in idx) for idx in perm_indices)
    arm_out, ldj, s_all, t_all = _normalizing_flow_forward_impl(
        arm_poses, cart_poses, params, perm_indices)
    num_layers = len(perm_indices)
    s_hist = [s_all[l] for l in range(num_layers)]
    t_hist = [t_all[l] for l in range(num_layers)]
    return arm_out, ldj, s_hist, t_hist


# ------------------------------------------------------------------ host-side setup
def make_conditional_net_params(key, layer_specs):
    """Kaiming-normal-like init (weights), zero biases.  W stored [in, out]."""
    params = []
    for spec in layer_specs:
        fan_in, fan_out = spec[0], spec[1]
        key, sub = jax.random.split(key)
        w = jax.random.normal(sub, (fan_in, fan_out), jnp.float32) * np.sqrt(2.0 / fan_in)
        b = jnp.zeros((1, fan_out), jnp.float32)
        params.append((w, b))
    return params


def make_permutation_indices(arm_dim, permute_seed, num_layers):
    """Replicates Permute_Layer: np.random.default_rng(seed).shuffle(arange(arm_dim))."""
    idx_list = []
    for i in range(num_layers):
        rng = np.random.default_rng(seed=permute_seed + i)
        idx = np.arange(arm_dim)
        rng.shuffle(idx)
        idx_list.append(tuple(int(j) for j in idx))
    return tuple(idx_list)


def _reference_forward(arm, cond, params, perm_indices):
    """Pure-JAX reference of the PyTorch forward (float32)."""
    (w1, b1), (w2, b2), (w3, b3) = params
    half = arm.shape[1] // 2
    ldj = None
    s_hist, t_hist = [], []
    for idx in perm_indices:
        const, alt = arm[:, :half], arm[:, half:]
        x = jnp.concatenate([const, cond], axis=1)
        h = jnp.maximum(x @ w1 + b1, 0.0)
        h = jnp.maximum(h @ w2 + b2, 0.0)
        out = h @ w3 + b3
        s, t = out[:, :half], out[:, half:]
        ldj = jnp.sum(s, axis=1)
        alt = alt * jnp.exp(s) + t
        arm = jnp.concatenate([const, alt], axis=1)[:, list(idx)]
        s_hist.append(s)
        t_hist.append(t)
    return arm, ldj, s_hist, t_hist


# ------------------------------------------------------------------------------ main
if __name__ == "__main__":
    # Small shapes consistent with the module:
    #   arm_dim = 8 (must be even), conditions (cart poses) dim = 4, batch = 8, hidden = 32
    B, ARM_DIM, COND_DIM, HIDDEN = 8, 8, 4, 32
    NUM_LAYERS, PERMUTE_SEED = 3, 0

    # Conditional_Net layer_specs: input = arm_dim/2 + cond_dim, output = arm_dim (s||t)
    layer_specs = [
        (ARM_DIM // 2 + COND_DIM, HIDDEN, True),
        (HIDDEN, HIDDEN, True),
        (HIDDEN, ARM_DIM, True),
    ]

    key = jax.random.PRNGKey(0)
    k_params, k_arm, k_cond = jax.random.split(key, 3)

    params = make_conditional_net_params(k_params, layer_specs)
    perm_indices = make_permutation_indices(ARM_DIM, PERMUTE_SEED, NUM_LAYERS)

    initial_arm_poses = jax.random.normal(k_arm, (B, ARM_DIM), jnp.float32)
    cart_poses = jax.random.normal(k_cond, (B, COND_DIM), jnp.float32)

    generated_arm_poses, log_det_jac, s_hist, t_hist = normalizing_flow_forward(
        initial_arm_poses, cart_poses, params, perm_indices)

    jax.block_until_ready(generated_arm_poses)
    jax.block_until_ready(log_det_jac)

    # Shape checks
    assert generated_arm_poses.shape == (B, ARM_DIM)
    assert log_det_jac.shape == (B,)
    assert len(s_hist) == NUM_LAYERS and s_hist[0].shape == (B, ARM_DIM // 2)
    assert len(t_hist) == NUM_LAYERS and t_hist[0].shape == (B, ARM_DIM // 2)

    # Numerical check against a pure-JAX reference of the PyTorch forward.
    ref_arm, ref_ldj, ref_s, ref_t = _reference_forward(
        initial_arm_poses, cart_poses, params, perm_indices)
    np.testing.assert_allclose(np.asarray(generated_arm_poses), np.asarray(ref_arm),
                               rtol=1e-4, atol=1e-4)
    np.testing.assert_allclose(np.asarray(log_det_jac), np.asarray(ref_ldj),
                               rtol=1e-4, atol=1e-4)
    for l in range(NUM_LAYERS):
        np.testing.assert_allclose(np.asarray(s_hist[l]), np.asarray(ref_s[l]),
                                   rtol=1e-4, atol=1e-4)
        np.testing.assert_allclose(np.asarray(t_hist[l]), np.asarray(ref_t[l]),
                                   rtol=1e-4, atol=1e-4)

    print("KERNEL_OK")
</pallas_src>

<mosaic_0001>
module attributes {stable_mosaic.version = 11 : i64} {
  func.func @_flow_kernel(%arg0: i32, %arg1: memref<8x256xf32, #tpu.memory_space<vmem>>, %arg2: memref<4x256xf32, #tpu.memory_space<vmem>>, %arg3: memref<32x4xf32, #tpu.memory_space<vmem>>, %arg4: memref<32x4xf32, #tpu.memory_space<vmem>>, %arg5: memref<32x1xf32, #tpu.memory_space<vmem>>, %arg6: memref<32x32xf32, #tpu.memory_space<vmem>>, %arg7: memref<32x1xf32, #tpu.memory_space<vmem>>, %arg8: memref<8x32xf32, #tpu.memory_space<vmem>>, %arg9: memref<8x1xf32, #tpu.memory_space<vmem>>, %arg10: memref<8x256xf32, #tpu.memory_space<vmem>>, %arg11: memref<3x8x256xf32, #tpu.memory_space<vmem>>, %arg12: memref<1x256xf32, #tpu.memory_space<vmem>>) attributes {dimension_semantics = [#tpu.dimension_semantics<parallel>], iteration_bounds = array<i64: 2>, scalar_prefetch = 0 : i64, scratch_operands = 0 : i64, tpu.core_type = #tpu.core_type<tc>, window_params = [{transform_indices = @transform_0, window_bounds = array<i64: 8, 256>}, {transform_indices = @transform_1, window_bounds = array<i64: 4, 256>}, {pipeline_mode = #tpu.pipeline_mode<synchronous>, transform_indices = @transform_2, window_bounds = array<i64: 32, 4>}, {pipeline_mode = #tpu.pipeline_mode<synchronous>, transform_indices = @transform_3, window_bounds = array<i64: 32, 4>}, {pipeline_mode = #tpu.pipeline_mode<synchronous>, transform_indices = @transform_4, window_bounds = array<i64: 32, 1>}, {pipeline_mode = #tpu.pipeline_mode<synchronous>, transform_indices = @transform_5, window_bounds = array<i64: 32, 32>}, {pipeline_mode = #tpu.pipeline_mode<synchronous>, transform_indices = @transform_6, window_bounds = array<i64: 32, 1>}, {pipeline_mode = #tpu.pipeline_mode<synchronous>, transform_indices = @transform_7, window_bounds = array<i64: 8, 32>}, {pipeline_mode = #tpu.pipeline_mode<synchronous>, transform_indices = @transform_8, window_bounds = array<i64: 8, 1>}, {transform_indices = @transform_9, window_bounds = array<i64: 8, 256>}, {transform_indices = @transform_10, window_bounds = array<i64: 3, 8, 256>}, {transform_indices = @transform_11, window_bounds = array<i64: 1, 256>}]} {
    %c0 = arith.constant 0 : index
    %c0_0 = arith.constant 0 : index
    %0 = vector.load %arg3[%c0, %c0_0] : memref<32x4xf32, #tpu.memory_space<vmem>>, vector<32x4xf32>
    %c0_1 = arith.constant 0 : index
    %c0_2 = arith.constant 0 : index
    %1 = vector.load %arg6[%c0_1, %c0_2] : memref<32x32xf32, #tpu.memory_space<vmem>>, vector<32x32xf32>
    %c0_3 = arith.constant 0 : index
    %c0_4 = arith.constant 0 : index
    %2 = vector.load %arg8[%c0_3, %c0_4] : memref<8x32xf32, #tpu.memory_space<vmem>>, vector<8x32xf32>
    %c0_5 = arith.constant 0 : index
    %c0_6 = arith.constant 0 : index
    %3 = vector.load %arg7[%c0_5, %c0_6] : memref<32x1xf32, #tpu.memory_space<vmem>>, vector<32x1xf32>
    %4 = vector.shape_cast %3 : vector<32x1xf32> to vector<32x1xf32>
    %5 = vector.broadcast %4 : vector<32x1xf32> to vector<32x256xf32>
    %c0_7 = arith.constant 0 : index
    %c0_8 = arith.constant 0 : index
    %6 = vector.load %arg9[%c0_7, %c0_8] : memref<8x1xf32, #tpu.memory_space<vmem>>, vector<8x1xf32>
    %7 = vector.shape_cast %6 : vector<8x1xf32> to vector<8x1xf32>
    %8 = vector.broadcast %7 : vector<8x1xf32> to vector<8x256xf32>
    %c0_9 = arith.constant 0 : index
    %c0_10 = arith.constant 0 : index
    %9 = vector.load %arg4[%c0_9, %c0_10] : memref<32x4xf32, #tpu.memory_space<vmem>>, vector<32x4xf32>
    %c0_11 = arith.constant 0 : index
    %c0_12 = arith.constant 0 : index
    %10 = vector.load %arg2[%c0_11, %c0_12] : memref<4x256xf32, #tpu.memory_space<vmem>>, vector<4x256xf32>
    %cst = arith.constant dense<0.000000e+00> : vector<32x256xf32>
    %11 = tpu.matmul %9, %10, %cst {dimension_numbers = #tpu.dot_dimension_numbers<[1], [0], [0], [1], [0, 0, 1, 1], [], []>} : vector<32x4xf32>, vector<4x256xf32>, vector<32x256xf32> -> vector<32x256xf32>
    %c0_13 = arith.constant 0 : index
    %c0_14 = arith.constant 0 : index
    %12 = vector.load %arg5[%c0_13, %c0_14] : memref<32x1xf32, #tpu.memory_space<vmem>>, vector<32x1xf32>
    %13 = vector.shape_cast %12 : vector<32x1xf32> to vector<32x1xf32>
    %14 = vector.broadcast %13 : vector<32x1xf32> to vector<32x256xf32>
    %15 = arith.addf %11, %14 : vector<32x256xf32>
    %c0_15 = arith.constant 0 : index
    %c0_16 = arith.constant 0 : index
    %16 = vector.load %arg1[%c0_15, %c0_16] : memref<8x256xf32, #tpu.memory_space<vmem>>, vector<8x256xf32>
    %17 = vector.extract_strided_slice %16 {offsets = [0, 0], sizes = [4, 256], strides = [1, 1]} : vector<8x256xf32> to vector<4x256xf32>
    %18 = vector.extract_strided_slice %16 {offsets = [4, 0], sizes = [4, 256], strides = [1, 1]} : vector<8x256xf32> to vector<4x256xf32>
    %cst_17 = arith.constant dense<0.000000e+00> : vector<32x256xf32>
    %19 = tpu.matmul %0, %17, %cst_17 {dimension_numbers = #tpu.dot_dimension_numbers<[1], [0], [0], [1], [0, 0, 1, 1], [], []>} : vector<32x4xf32>, vector<4x256xf32>, vector<32x256xf32> -> vector<32x256xf32>
    %20 = arith.addf %19, %15 : vector<32x256xf32>
    %cst_18 = arith.constant 0.000000e+00 : f32
    %21 = vector.broadcast %cst_18 : f32 to vector<32x256xf32>
    %22 = arith.maximumf %20, %21 : vector<32x256xf32>
    %cst_19 = arith.constant dense<0.000000e+00> : vector<32x256xf32>
    %23 = tpu.matmul %1, %22, %cst_19 {dimension_numbers = #tpu.dot_dimension_numbers<[1], [0], [0], [1], [0, 0, 1, 1], [], []>} : vector<32x32xf32>, vector<32x256xf32>, vector<32x256xf32> -> vector<32x256xf32>
    %24 = arith.addf %23, %5 : vector<32x256xf32>
    %cst_20 = arith.constant 0.000000e+00 : f32
    %25 = vector.broadcast %cst_20 : f32 to vector<32x256xf32>
    %26 = arith.maximumf %24, %25 : vector<32x256xf32>
    %cst_21 = arith.constant dense<0.000000e+00> : vector<8x256xf32>
    %27 = tpu.matmul %2, %26, %cst_21 {dimension_numbers = #tpu.dot_dimension_numbers<[1], [0], [0], [1], [0, 0, 1, 1], [], []>} : vector<8x32xf32>, vector<32x256xf32>, vector<8x256xf32> -> vector<8x256xf32>
    %28 = arith.addf %27, %8 : vector<8x256xf32>
    %c0_22 = arith.constant 0 : index
    %c0_23 = arith.constant 0 : index
    %c0_24 = arith.constant 0 : index
    %29 = vector.load %arg11[%c0_22, %c0_23, %c0_24] : memref<3x8x256xf32, #tpu.memory_space<vmem>>, vector<1x8x256xf32>
    %30 = vector.shape_cast %29 : vector<1x8x256xf32> to vector<8x256xf32>
    %31 = vector.shape_cast %28 : vector<8x256xf32> to vector<1x8x256xf32>
    tpu.vector_store %arg11[%c0_22, %c0_23, %c0_24], %31 {strides = array<i32>} : memref<3x8x256xf32, #tpu.memory_space<vmem>>, vector<1x8x256xf32>,
    %32 = vector.extract_strided_slice %28 {offsets = [0, 0], sizes = [4, 256], strides = [1, 1]} : vector<8x256xf32> to vector<4x256xf32>
    %33 = vector.extract_strided_slice %28 {offsets = [4, 0], sizes = [4, 256], strides = [1, 1]} : vector<8x256xf32> to vector<4x256xf32>
    %34 = math.exp %32 : vector<4x256xf32>
    %35 = arith.mulf %18, %34 : vector<4x256xf32>
    %36 = arith.addf %35, %33 : vector<4x256xf32>
    %37 = vector.extract_strided_slice %17 {offsets = [2, 0], sizes = [1, 256], strides = [1, 1]} : vector<4x256xf32> to vector<1x256xf32>
    %38 = vector.extract_strided_slice %36 {offsets = [0, 0], sizes = [1, 256], strides = [1, 1]} : vector<4x256xf32> to vector<1x256xf32>
    %39 = vector.extract_strided_slice %17 {offsets = [3, 0], sizes = [1, 256], strides = [1, 1]} : vector<4x256xf32> to vector<1x256xf32>
    %40 = vector.extract_strided_slice %36 {offsets = [2, 0], sizes = [1, 256], strides = [1, 1]} : vector<4x256xf32> to vector<1x256xf32>
    %41 = vector.extract_strided_slice %36 {offsets = [1, 0], sizes = [1, 256], strides = [1, 1]} : vector<4x256xf32> to vector<1x256xf32>
    %42 = vector.extract_strided_slice %17 {offsets = [0, 0], sizes = [1, 256], strides = [1, 1]} : vector<4x256xf32> to vector<1x256xf32>
    %43 = vector.extract_strided_slice %17 {offsets = [1, 0], sizes = [1, 256], strides = [1, 1]} : vector<4x256xf32> to vector<1x256xf32>
    %44 = vector.extract_strided_slice %36 {offsets = [3, 0], sizes = [1, 256], strides = [1, 1]} : vector<4x256xf32> to vector<1x256xf32>
    %45 = tpu.concatenate %37, %38, %39, %40, %41, %42, %43, %44 in 0 : vector<1x256xf32>, vector<1x256xf32>, vector<1x256xf32>, vector<1x256xf32>, vector<1x256xf32>, vector<1x256xf32>, vector<1x256xf32>, vector<1x256xf32> -> vector<8x256xf32>
    %46 = vector.extract_strided_slice %45 {offsets = [0, 0], sizes = [4, 256], strides = [1, 1]} : vector<8x256xf32> to vector<4x256xf32>
    %47 = vector.extract_strided_slice %45 {offsets = [4, 0], sizes = [4, 256], strides = [1, 1]} : vector<8x256xf32> to vector<4x256xf32>
    %cst_25 = arith.constant dense<0.000000e+00> : vector<32x256xf32>
    %48 = tpu.matmul %0, %46, %cst_25 {dimension_numbers = #tpu.dot_dimension_numbers<[1], [0], [0], [1], [0, 0, 1, 1], [], []>} : vector<32x4xf32>, vector<4x256xf32>, vector<32x256xf32> -> vector<32x256xf32>
    %49 = arith.addf %48, %15 : vector<32x256xf32>
    %cst_26 = arith.constant 0.000000e+00 : f32
    %50 = vector.broadcast %cst_26 : f32 to vector<32x256xf32>
    %51 = arith.maximumf %49, %50 : vector<32x256xf32>
    %cst_27 = arith.constant dense<0.000000e+00> : vector<32x256xf32>
    %52 = tpu.matmul %1, %51, %cst_27 {dimension_numbers = #tpu.dot_dimension_numbers<[1], [0], [0], [1], [0, 0, 1, 1], [], []>} : vector<32x32xf32>, vector<32x256xf32>, vector<32x256xf32> -> vector<32x256xf32>
    %53 = arith.addf %52, %5 : vector<32x256xf32>
    %cst_28 = arith.constant 0.000000e+00 : f32
    %54 = vector.broadcast %cst_28 : f32 to vector<32x256xf32>
    %55 = arith.maximumf %53, %54 : vector<32x256xf32>
    %cst_29 = arith.constant dense<0.000000e+00> : vector<8x256xf32>
    %56 = tpu.matmul %2, %55, %cst_29 {dimension_numbers = #tpu.dot_dimension_numbers<[1], [0], [0], [1], [0, 0, 1, 1], [], []>} : vector<8x32xf32>, vector<32x256xf32>, vector<8x256xf32> -> vector<8x256xf32>
    %57 = arith.addf %56, %8 : vector<8x256xf32>
    %c1 = arith.constant 1 : index
    %c0_30 = arith.constant 0 : index
    %c0_31 = arith.constant 0 : index
    %58 = vector.load %arg11[%c1, %c0_30, %c0_31] : memref<3x8x256xf32, #tpu.memory_space<vmem>>, vector<1x8x256xf32>
    %59 = vector.shape_cast %58 : vector<1x8x256xf32> to vector<8x256xf32>
    %60 = vector.shape_cast %57 : vector<8x256xf32> to vector<1x8x256xf32>
    tpu.vector_store %arg11[%c1, %c0_30, %c0_31], %60 {strides = array<i32>} : memref<3x8x256xf32, #tpu.memory_space<vmem>>, vector<1x8x256xf32>,
    %61 = vector.extract_strided_slice %57 {offsets = [0, 0], sizes = [4, 256], strides = [1, 1]} : vector<8x256xf32> to vector<4x256xf32>
    %62 = vector.extract_strided_slice %57 {offsets = [4, 0], sizes = [4, 256], strides = [1, 1]} : vector<8x256xf32> to vector<4x256xf32>
    %63 = math.exp %61 : vector<4x256xf32>
    %64 = arith.mulf %47, %63 : vector<4x256xf32>
    %65 = arith.addf %64, %62 : vector<4x256xf32>
    %66 = vector.extract_strided_slice %65 {offsets = [1, 0], sizes = [1, 256], strides = [1, 1]} : vector<4x256xf32> to vector<1x256xf32>
    %67 = vector.extract_strided_slice %46 {offsets = [0, 0], sizes = [1, 256], strides = [1, 1]} : vector<4x256xf32> to vector<1x256xf32>
    %68 = vector.extract_strided_slice %46 {offsets = [1, 0], sizes = [1, 256], strides = [1, 1]} : vector<4x256xf32> to vector<1x256xf32>
    %69 = vector.extract_strided_slice %65 {offsets = [0, 0], sizes = [1, 256], strides = [1, 1]} : vector<4x256xf32> to vector<1x256xf32>
    %70 = vector.extract_strided_slice %46 {offsets = [2, 0], sizes = [1, 256], strides = [1, 1]} : vector<4x256xf32> to vector<1x256xf32>
    %71 = vector.extract_strided_slice %65 {offsets = [2, 0], sizes = [1, 256], strides = [1, 1]} : vector<4x256xf32> to vector<1x256xf32>
    %72 = vector.extract_strided_slice %46 {offsets = [3, 0], sizes = [1, 256], strides = [1, 1]} : vector<4x256xf32> to vector<1x256xf32>
    %73 = vector.extract_strided_slice %65 {offsets = [3, 0], sizes = [1, 256], strides = [1, 1]} : vector<4x256xf32> to vector<1x256xf32>
    %74 = tpu.concatenate %66, %67, %68, %69, %70, %71, %72, %73 in 0 : vector<1x256xf32>, vector<1x256xf32>, vector<1x256xf32>, vector<1x256xf32>, vector<1x256xf32>, vector<1x256xf32>, vector<1x256xf32>, vector<1x256xf32> -> vector<8x256xf32>
    %75 = vector.extract_strided_slice %74 {offsets = [0, 0], sizes = [4, 256], strides = [1, 1]} : vector<8x256xf32> to vector<4x256xf32>
    %76 = vector.extract_strided_slice %74 {offsets = [4, 0], sizes = [4, 256], strides = [1, 1]} : vector<8x256xf32> to vector<4x256xf32>
    %cst_32 = arith.constant dense<0.000000e+00> : vector<32x256xf32>
    %77 = tpu.matmul %0, %75, %cst_32 {dimension_numbers = #tpu.dot_dimension_numbers<[1], [0], [0], [1], [0, 0, 1, 1], [], []>} : vector<32x4xf32>, vector<4x256xf32>, vector<32x256xf32> -> vector<32x256xf32>
    %78 = arith.addf %77, %15 : vector<32x256xf32>
    %cst_33 = arith.constant 0.000000e+00 : f32
    %79 = vector.broadcast %cst_33 : f32 to vector<32x256xf32>
    %80 = arith.maximumf %78, %79 : vector<32x256xf32>
    %cst_34 = arith.constant dense<0.000000e+00> : vector<32x256xf32>
    %81 = tpu.matmul %1, %80, %cst_34 {dimension_numbers = #tpu.dot_dimension_numbers<[1], [0], [0], [1], [0, 0, 1, 1], [], []>} : vector<32x32xf32>, vector<32x256xf32>, vector<32x256xf32> -> vector<32x256xf32>
    %82 = arith.addf %81, %5 : vector<32x256xf32>
    %cst_35 = arith.constant 0.000000e+00 : f32
    %83 = vector.broadcast %cst_35 : f32 to vector<32x256xf32>
    %84 = arith.maximumf %82, %83 : vector<32x256xf32>
    %cst_36 = arith.constant dense<0.000000e+00> : vector<8x256xf32>
    %85 = tpu.matmul %2, %84, %cst_36 {dimension_numbers = #tpu.dot_dimension_numbers<[1], [0], [0], [1], [0, 0, 1, 1], [], []>} : vector<8x32xf32>, vector<32x256xf32>, vector<8x256xf32> -> vector<8x256xf32>
    %86 = arith.addf %85, %8 : vector<8x256xf32>
    %c2 = arith.constant 2 : index
    %c0_37 = arith.constant 0 : index
    %c0_38 = arith.constant 0 : index
    %87 = vector.load %arg11[%c2, %c0_37, %c0_38] : memref<3x8x256xf32, #tpu.memory_space<vmem>>, vector<1x8x256xf32>
    %88 = vector.shape_cast %87 : vector<1x8x256xf32> to vector<8x256xf32>
    %89 = vector.shape_cast %86 : vector<8x256xf32> to vector<1x8x256xf32>
    tpu.vector_store %arg11[%c2, %c0_37, %c0_38], %89 {strides = array<i32>} : memref<3x8x256xf32, #tpu.memory_space<vmem>>, vector<1x8x256xf32>,
    %90 = vector.extract_strided_slice %86 {offsets = [0, 0], sizes = [4, 256], strides = [1, 1]} : vector<8x256xf32> to vector<4x256xf32>
    %91 = vector.extract_strided_slice %86 {offsets = [4, 0], sizes = [4, 256], strides = [1, 1]} : vector<8x256xf32> to vector<4x256xf32>
    %cst_39 = arith.constant dense<0.000000e+00> : vector<256xf32>
    %92 = vector.multi_reduction <add>, %90, %cst_39 [0] : vector<4x256xf32> to vector<256xf32>
    %93 = vector.shape_cast %92 : vector<256xf32> to vector<1x256xf32>
    %c0_40 = arith.constant 0 : index
    %c0_41 = arith.constant 0 : index
    %94 = vector.load %arg12[%c0_40, %c0_41] : memref<1x256xf32, #tpu.memory_space<vmem>>, vector<1x256xf32>
    tpu.vector_store %arg12[%c0_40, %c0_41], %93 {strides = array<i32>} : memref<1x256xf32, #tpu.memory_space<vmem>>, vector<1x256xf32>,
    %95 = math.exp %90 : vector<4x256xf32>
    %96 = arith.mulf %76, %95 : vector<4x256xf32>
    %97 = arith.addf %96, %91 : vector<4x256xf32>
    %98 = vector.extract_strided_slice %97 {offsets = [2, 0], sizes = [1, 256], strides = [1, 1]} : vector<4x256xf32> to vector<1x256xf32>
    %99 = vector.extract_strided_slice %97 {offsets = [1, 0], sizes = [1, 256], strides = [1, 1]} : vector<4x256xf32> to vector<1x256xf32>
    %100 = vector.extract_strided_slice %97 {offsets = [3, 0], sizes = [1, 256], strides = [1, 1]} : vector<4x256xf32> to vector<1x256xf32>
    %101 = vector.extract_strided_slice %75 {offsets = [2, 0], sizes = [1, 256], strides = [1, 1]} : vector<4x256xf32> to vector<1x256xf32>
    %102 = vector.extract_strided_slice %75 {offsets = [3, 0], sizes = [1, 256], strides = [1, 1]} : vector<4x256xf32> to vector<1x256xf32>
    %103 = vector.extract_strided_slice %97 {offsets = [0, 0], sizes = [1, 256], strides = [1, 1]} : vector<4x256xf32> to vector<1x256xf32>
    %104 = vector.extract_strided_slice %75 {offsets = [0, 0], sizes = [1, 256], strides = [1, 1]} : vector<4x256xf32> to vector<1x256xf32>
    %105 = vector.extract_strided_slice %75 {offsets = [1, 0], sizes = [1, 256], strides = [1, 1]} : vector<4x256xf32> to vector<1x256xf32>
    %106 = tpu.concatenate %98, %99, %100, %101, %102, %103, %104, %105 in 0 : vector<1x256xf32>, vector<1x256xf32>, vector<1x256xf32>, vector<1x256xf32>, vector<1x256xf32>, vector<1x256xf32>, vector<1x256xf32>, vector<1x256xf32> -> vector<8x256xf32>
    %c0_42 = arith.constant 0 : index
    %c0_43 = arith.constant 0 : index
    %107 = vector.load %arg10[%c0_42, %c0_43] : memref<8x256xf32, #tpu.memory_space<vmem>>, vector<8x256xf32>
    tpu.vector_store %arg10[%c0_42, %c0_43], %106 {strides = array<i32>} : memref<8x256xf32, #tpu.memory_space<vmem>>, vector<8x256xf32>,
    return
  }
  func.func @transform_0(%arg0: i32) -> (i32, i32) {
    %c0_i32 = arith.constant 0 : i32
    %c0_i32_0 = arith.constant 0 : i32
    return %c0_i32, %arg0 : i32, i32
  }
  func.func @transform_1(%arg0: i32) -> (i32, i32) {
    %c0_i32 = arith.constant 0 : i32
    %c0_i32_0 = arith.constant 0 : i32
    return %c0_i32, %arg0 : i32, i32
  }
  func.func @transform_2(%arg0: i32) -> (i32, i32) {
    %c0_i32 = arith.constant 0 : i32
    %c0_i32_0 = arith.constant 0 : i32
    %c0_i32_1 = arith.constant 0 : i32
    return %c0_i32, %c0_i32_0 : i32, i32
  }
  func.func @transform_3(%arg0: i32) -> (i32, i32) {
    %c0_i32 = arith.constant 0 : i32
    %c0_i32_0 = arith.constant 0 : i32
    %c0_i32_1 = arith.constant 0 : i32
    return %c0_i32, %c0_i32_0 : i32, i32
  }
  func.func @transform_4(%arg0: i32) -> (i32, i32) {
    %c0_i32 = arith.constant 0 : i32
    %c0_i32_0 = arith.constant 0 : i32
    %c0_i32_1 = arith.constant 0 : i32
    return %c0_i32, %c0_i32_0 : i32, i32
  }
  func.func @transform_5(%arg0: i32) -> (i32, i32) {
    %c0_i32 = arith.constant 0 : i32
    %c0_i32_0 = arith.constant 0 : i32
    %c0_i32_1 = arith.constant 0 : i32
    return %c0_i32, %c0_i32_0 : i32, i32
  }
  func.func @transform_6(%arg0: i32) -> (i32, i32) {
    %c0_i32 = arith.constant 0 : i32
    %c0_i32_0 = arith.constant 0 : i32
    %c0_i32_1 = arith.constant 0 : i32
    return %c0_i32, %c0_i32_0 : i32, i32
  }
  func.func @transform_7(%arg0: i32) -> (i32, i32) {
    %c0_i32 = arith.constant 0 : i32
    %c0_i32_0 = arith.constant 0 : i32
    %c0_i32_1 = arith.constant 0 : i32
    return %c0_i32, %c0_i32_0 : i32, i32
  }
  func.func @transform_8(%arg0: i32) -> (i32, i32) {
    %c0_i32 = arith.constant 0 : i32
    %c0_i32_0 = arith.constant 0 : i32
    %c0_i32_1 = arith.constant 0 : i32
    return %c0_i32, %c0_i32_0 : i32, i32
  }
  func.func @transform_9(%arg0: i32) -> (i32, i32) {
    %c0_i32 = arith.constant 0 : i32
    %c0_i32_0 = arith.constant 0 : i32
    return %c0_i32, %arg0 : i32, i32
  }
  func.func @transform_10(%arg0: i32) -> (i32, i32, i32) {
    %c0_i32 = arith.constant 0 : i32
    %c0_i32_0 = arith.constant 0 : i32
    %c0_i32_1 = arith.constant 0 : i32
    return %c0_i32, %c0_i32_0, %arg0 : i32, i32, i32
  }
  func.func @transform_11(%arg0: i32) -> (i32, i32) {
    %c0_i32 = arith.constant 0 : i32
    %c0_i32_0 = arith.constant 0 : i32
    return %c0_i32, %arg0 : i32, i32
  }
}

</mosaic_0001>

<llo_original>
// kernel: _normalizing_flow_forward_impl.1
$region0: #{_normalizing_flow_forward_impl.1}
  #allocation0 [shape = 'u32[]', space=smem, size = 0x4, offset = 0x4, fixed_abs, tag = 'smem constant byte address 0x4 - core index']
  #allocation1 [shape = 'u32[144,128]{1,0:T(1,128)}', space=vmem, size = 0x12000, scoped, tag = 'internal scratch']
  %s0 = inlined_call_operand.vmem [shape: f32[8,512], index: 0, kind: input, shape index: {}]
  %s1 = inlined_call_operand.vmem [shape: f32[4,512], index: 1, kind: input, shape index: {}]
  %s2 = inlined_call_operand.vmem [shape: f32[32,4], index: 2, kind: input, shape index: {}]
  %s3 = inlined_call_operand.vmem [shape: f32[32,4], index: 3, kind: input, shape index: {}]
  %s4 = inlined_call_operand.vmem [shape: f32[32,1], index: 4, kind: input, shape index: {}]
  %s5 = inlined_call_operand.vmem [shape: f32[32,32], index: 5, kind: input, shape index: {}]
  %s6 = inlined_call_operand.vmem [shape: f32[32,1], index: 6, kind: input, shape index: {}]
  %s7 = inlined_call_operand.vmem [shape: f32[8,32], index: 7, kind: input, shape index: {}]
  %s8 = inlined_call_operand.vmem [shape: f32[8,1], index: 8, kind: input, shape index: {}]
  %s9 = inlined_call_operand.vmem [shape: f32[8,512], index: 9, kind: output, shape index: {0}]
  %s10 = inlined_call_operand.vmem [shape: f32[3,8,512], index: 10, kind: output, shape index: {1}]
  %s11 = inlined_call_operand.vmem [shape: f32[1,512], index: 11, kind: output, shape index: {2}]
  %12 = xla_tuple %s9, %s10, %s11
  %s13 = sld [smem:[#allocation0]]
  $region104: #{_normalizing_flow_forward_impl.1} parent=0
    _
  %s15 = ssub.s32 1, %s13
  %s16 = scalar_select 0, %s15, %s13
  $region1: #{_normalizing_flow_forward_impl.1} parent=0
    #allocation2 [shape = 'u8[49152]{0}', space=vmem, size = 0xc000, scoped, tag = 'output window, operand 1']
    loop: start=0, step=1, limit=4
    $region2: #{_normalizing_flow_forward_impl.1} parent=1 // loop_pre_header
      _
    $region3: #{_normalizing_flow_forward_impl.1} parent=1 // loop_header
      %s18 = sphi 0, %s22
      %p19 = scmp.ge.s32.totalorder %s18, 4
      %s28 = sphi 0, %s30
      %s31 = sphi 0, %s28
      %s32 = sphi 0, %s31
      %s48 = sphi 0, %s32
      %s54 = sphi 0, %s56
      %s57 = sphi 0, %s54
      %s58 = sphi 0, %s57
      %s74 = sphi 0, %s58
      %s78 = sphi 0, %s78
      %s80 = sphi 0, %s78
      %s81 = sphi 0, %s80
      %s95 = sphi 0, %s81
      %s99 = sphi 0, %s99
      %s101 = sphi 0, %s99
      %s102 = sphi 0, %s101
      %s116 = sphi 0, %s102
      %s120 = sphi 0, %s120
      %s122 = sphi 0, %s120
      %s123 = sphi 0, %s122
      %s137 = sphi 0, %s123
      %s141 = sphi 0, %s141
      %s143 = sphi 0, %s141
      %s144 = sphi 0, %s143
      %s158 = sphi 0, %s144
      %s162 = sphi 0, %s162
      %s164 = sphi 0, %s162
      %s165 = sphi 0, %s164
      %s179 = sphi 0, %s165
      %s183 = sphi 0, %s183
      %s185 = sphi 0, %s183
      %s186 = sphi 0, %s185
      %s200 = sphi 0, %s186
      %s204 = sphi 0, %s204
      %s206 = sphi 0, %s204
      %s207 = sphi 0, %s206
      %s221 = sphi 0, %s207
      %s227 = sphi 0, %s229
      %s230 = sphi 0, %s227
      %s231 = sphi 0, %s230
      %s247 = sphi 0, %s231
      %s253 = sphi 0, %s255
      %s256 = sphi 0, %s253
      %s257 = sphi 0, %s256
      %s273 = sphi 0, %s257
      %s279 = sphi 0, %s281
      %s282 = sphi 0, %s279
      %s283 = sphi 0, %s282
      %s299 = sphi 0, %s283
    $region4: #{_normalizing_flow_forward_impl.1} parent=1 // loop_header_branch
      %21 = sbr.rel (%p19) target = $region8
    $region5: #{_normalizing_flow_forward_impl.1} parent=1 // loop_body
      %s23 = ssub.s32 %s18, 1
      %s24 = ssub.s32 %s18, 2
      %s25 = sadd.s32 %s18, 1
      %s26 = ssub.s32 %s18, %s25
      %p27 = scmp.eq.s32.totalorder %s26, 0
      %s29 = sadd.s32 %s28, 1
      %s30 = scalar_select %p27, %s28, %s29
      %p33 = pneg %p27
      %p34 = scmp.eq.s32.totalorder %s18, 1
      %p35 = por %p33, %p34
      %p36 = scmp.ne.s32.totalorder %s28, %s31
      %p37 = scmp.eq.s32.totalorder %s18, 0
      %p38 = por %p36, %p37
      %p39 = scmp.ne.s32.totalorder %s28, %s31
      %p40 = scmp.eq.s32.totalorder %s23, 1
      %p41 = por %p39, %p40
      %p42 = scmp.ne.s32.totalorder %s31, %s32
      %p43 = scmp.eq.s32.totalorder %s23, 0
      %p44 = por %p42, %p43
      %p45 = scmp.ne.s32.totalorder %s31, %s32
      %p46 = scmp.eq.s32.totalorder %s24, 1
      %p47 = por %p45, %p46
      %p49 = scmp.ne.s32.totalorder %s32, %s48
      %p50 = scmp.eq.s32.totalorder %s24, 0
      %p51 = por %p49, %p50
      %s52 = ssub.s32 %s18, %s25
      %p53 = scmp.eq.s32.totalorder %s52, 0
      %s55 = sadd.s32 %s54, 1
      %s56 = scalar_select %p53, %s54, %s55
      %p59 = pneg %p53
      %p60 = scmp.eq.s32.totalorder %s18, 1
      %p61 = por %p59, %p60
      %p62 = scmp.ne.s32.totalorder %s54, %s57
      %p63 = scmp.eq.s32.totalorder %s18, 0
      %p64 = por %p62, %p63
      %p65 = scmp.ne.s32.totalorder %s54, %s57
      %p66 = scmp.eq.s32.totalorder %s23, 1
      %p67 = por %p65, %p66
      %p68 = scmp.ne.s32.totalorder %s57, %s58
      %p69 = scmp.eq.s32.totalorder %s23, 0
      %p70 = por %p68, %p69
      %p71 = scmp.ne.s32.totalorder %s57, %s58
      %p72 = scmp.eq.s32.totalorder %s24, 1
      %p73 = por %p71, %p72
      %p75 = scmp.ne.s32.totalorder %s58, %s74
      %p76 = scmp.eq.s32.totalorder %s24, 0
      %p77 = por %p75, %p76
      %s79 = sadd.s32 %s78, 1
      %p82 = scmp.eq.s32.totalorder %s18, 1
      %p83 = scmp.ne.s32.totalorder %s78, %s80
      %p84 = scmp.eq.s32.totalorder %s18, 0
      %p85 = por %p83, %p84
      %p86 = scmp.ne.s32.totalorder %s78, %s80
      %p87 = scmp.eq.s32.totalorder %s23, 1
      %p88 = por %p86, %p87
      %p89 = scmp.ne.s32.totalorder %s80, %s81
      %p90 = scmp.eq.s32.totalorder %s23, 0
      %p91 = por %p89, %p90
      %p92 = scmp.ne.s32.totalorder %s80, %s81
      %p93 = scmp.eq.s32.totalorder %s24, 1
      %p94 = por %p92, %p93
      %p96 = scmp.ne.s32.totalorder %s81, %s95
      %p97 = scmp.eq.s32.totalorder %s24, 0
      %p98 = por %p96, %p97
      %s100 = sadd.s32 %s99, 1
      %p103 = scmp.eq.s32.totalorder %s18, 1
      %p104 = scmp.ne.s32.totalorder %s99, %s101
      %p105 = scmp.eq.s32.totalorder %s18, 0
      %p106 = por %p104, %p105
      %p107 = scmp.ne.s32.totalorder %s99, %s101
      %p108 = scmp.eq.s32.totalorder %s23, 1
      %p109 = por %p107, %p108
      %p110 = scmp.ne.s32.totalorder %s101, %s102
      %p111 = scmp.eq.s32.totalorder %s23, 0
      %p112 = por %p110, %p111
      %p113 = scmp.ne.s32.totalorder %s101, %s102
      %p114 = scmp.eq.s32.totalorder %s24, 1
      %p115 = por %p113, %p114
      %p117 = scmp.ne.s32.totalorder %s102, %s116
      %p118 = scmp.eq.s32.totalorder %s24, 0
      %p119 = por %p117, %p118
      %s121 = sadd.s32 %s120, 1
      %p124 = scmp.eq.s32.totalorder %s18, 1
      %p125 = scmp.ne.s32.totalorder %s120, %s122
      %p126 = scmp.eq.s32.totalorder %s18, 0
      %p127 = por %p125, %p126
      %p128 = scmp.ne.s32.totalorder %s120, %s122
      %p129 = scmp.eq.s32.totalorder %s23, 1
      %p130 = por %p128, %p129
      %p131 = scmp.ne.s32.totalorder %s122, %s123
      %p132 = scmp.eq.s32.totalorder %s23, 0
      %p133 = por %p131, %p132
      %p134 = scmp.ne.s32.totalorder %s122, %s123
      %p135 = scmp.eq.s32.totalorder %s24, 1
      %p136 = por %p134, %p135
      %p138 = scmp.ne.s32.totalorder %s123, %s137
      %p139 = scmp.eq.s32.totalorder %s24, 0
      %p140 = por %p138, %p139
      %s142 = sadd.s32 %s141, 1
      %p145 = scmp.eq.s32.totalorder %s18, 1
      %p146 = scmp.ne.s32.totalorder %s141, %s143
      %p147 = scmp.eq.s32.totalorder %s18, 0
      %p148 = por %p146, %p147
      %p149 = scmp.ne.s32.totalorder %s141, %s143
      %p150 = scmp.eq.s32.totalorder %s23, 1
      %p151 = por %p149, %p150
      %p152 = scmp.ne.s32.totalorder %s143, %s144
      %p153 = scmp.eq.s32.totalorder %s23, 0
      %p154 = por %p152, %p153
      %p155 = scmp.ne.s32.totalorder %s143, %s144
      %p156 = scmp.eq.s32.totalorder %s24, 1
      %p157 = por %p155, %p156
      %p159 = scmp.ne.s32.totalorder %s144, %s158
      %p160 = scmp.eq.s32.totalorder %s24, 0
      %p161 = por %p159, %p160
      %s163 = sadd.s32 %s162, 1
      %p166 = scmp.eq.s32.totalorder %s18, 1
      %p167 = scmp.ne.s32.totalorder %s162, %s164
      %p168 = scmp.eq.s32.totalorder %s18, 0
      %p169 = por %p167, %p168
      %p170 = scmp.ne.s32.totalorder %s162, %s164
      %p171 = scmp.eq.s32.totalorder %s23, 1
      %p172 = por %p170, %p171
      %p173 = scmp.ne.s32.totalorder %s164, %s165
      %p174 = scmp.eq.s32.totalorder %s23, 0
      %p175 = por %p173, %p174
      %p176 = scmp.ne.s32.totalorder %s164, %s165
      %p177 = scmp.eq.s32.totalorder %s24, 1
      %p178 = por %p176, %p177
      %p180 = scmp.ne.s32.totalorder %s165, %s179
      %p181 = scmp.eq.s32.totalorder %s24, 0
      %p182 = por %p180, %p181
      %s184 = sadd.s32 %s183, 1
      %p187 = scmp.eq.s32.totalorder %s18, 1
      %p188 = scmp.ne.s32.totalorder %s183, %s185
      %p189 = scmp.eq.s32.totalorder %s18, 0
      %p190 = por %p188, %p189
      %p191 = scmp.ne.s32.totalorder %s183, %s185
      %p192 = scmp.eq.s32.totalorder %s23, 1
      %p193 = por %p191, %p192
      %p194 = scmp.ne.s32.totalorder %s185, %s186
      %p195 = scmp.eq.s32.totalorder %s23, 0
      %p196 = por %p194, %p195
      %p197 = scmp.ne.s32.totalorder %s185, %s186
      %p198 = scmp.eq.s32.totalorder %s24, 1
      %p199 = por %p197, %p198
      %p201 = scmp.ne.s32.totalorder %s186, %s200
      %p202 = scmp.eq.s32.totalorder %s24, 0
      %p203 = por %p201, %p202
      %s205 = sadd.s32 %s204, 1
      %p208 = scmp.eq.s32.totalorder %s18, 1
      %p209 = scmp.ne.s32.totalorder %s204, %s206
      %p210 = scmp.eq.s32.totalorder %s18, 0
      %p211 = por %p209, %p210
      %p212 = scmp.ne.s32.totalorder %s204, %s206
      %p213 = scmp.eq.s32.totalorder %s23, 1
      %p214 = por %p212, %p213
      %p215 = scmp.ne.s32.totalorder %s206, %s207
      %p216 = scmp.eq.s32.totalorder %s23, 0
      %p217 = por %p215, %p216
      %p218 = scmp.ne.s32.totalorder %s206, %s207
      %p219 = scmp.eq.s32.totalorder %s24, 1
      %p220 = por %p218, %p219
      %p222 = scmp.ne.s32.totalorder %s207, %s221
      %p223 = scmp.eq.s32.totalorder %s24, 0
      %p224 = por %p222, %p223
      %s225 = ssub.s32 %s18, %s25
      %p226 = scmp.eq.s32.totalorder %s225, 0
      %s228 = sadd.s32 %s227, 1
      %s229 = scalar_select %p226, %s227, %s228
      %p232 = pneg %p226
      %p233 = scmp.eq.s32.totalorder %s18, 1
      %p234 = por %p232, %p233
      %p235 = scmp.ne.s32.totalorder %s227, %s230
      %p236 = scmp.eq.s32.totalorder %s18, 0
      %p237 = por %p235, %p236
      %p238 = scmp.ne.s32.totalorder %s227, %s230
      %p239 = scmp.eq.s32.totalorder %s23, 1
      %p240 = por %p238, %p239
      %p241 = scmp.ne.s32.totalorder %s230, %s231
      %p242 = scmp.eq.s32.totalorder %s23, 0
      %p243 = por %p241, %p242
      %p244 = scmp.ne.s32.totalorder %s230, %s231
      %p245 = scmp.eq.s32.totalorder %s24, 1
      %p246 = por %p244, %p245
      %p248 = scmp.ne.s32.totalorder %s231, %s247
      %p249 = scmp.eq.s32.totalorder %s24, 0
      %p250 = por %p248, %p249
      %s251 = ssub.s32 %s18, %s25
      %p252 = scmp.eq.s32.totalorder %s251, 0
      %s254 = sadd.s32 %s253, 1
      %s255 = scalar_select %p252, %s253, %s254
      %p258 = pneg %p252
      %p259 = scmp.eq.s32.totalorder %s18, 1
      %p260 = por %p258, %p259
      %p261 = scmp.ne.s32.totalorder %s253, %s256
      %p262 = scmp.eq.s32.totalorder %s18, 0
      %p263 = por %p261, %p262
      %p264 = scmp.ne.s32.totalorder %s253, %s256
      %p265 = scmp.eq.s32.totalorder %s23, 1
      %p266 = por %p264, %p265
      %p267 = scmp.ne.s32.totalorder %s256, %s257
      %p268 = scmp.eq.s32.totalorder %s23, 0
      %p269 = por %p267, %p268
      %p270 = scmp.ne.s32.totalorder %s256, %s257
      %p271 = scmp.eq.s32.totalorder %s24, 1
      %p272 = por %p270, %p271
      %p274 = scmp.ne.s32.totalorder %s257, %s273
      %p275 = scmp.eq.s32.totalorder %s24, 0
      %p276 = por %p274, %p275
      %s277 = ssub.s32 %s18, %s25
      %p278 = scmp.eq.s32.totalorder %s277, 0
      %s280 = sadd.s32 %s279, 1
      %s281 = scalar_select %p278, %s279, %s280
      %p284 = pneg %p278
      %p285 = scmp.eq.s32.totalorder %s18, 1
      %p286 = por %p284, %p285
      %p287 = scmp.ne.s32.totalorder %s279, %s282
      %p288 = scmp.eq.s32.totalorder %s18, 0
      %p289 = por %p287, %p288
      %p290 = scmp.ne.s32.totalorder %s279, %s282
      %p291 = scmp.eq.s32.totalorder %s23, 1
      %p292 = por %p290, %p291
      %p293 = scmp.ne.s32.totalorder %s282, %s283
      %p294 = scmp.eq.s32.totalorder %s23, 0
      %p295 = por %p293, %p294
      %p296 = scmp.ne.s32.totalorder %s282, %s283
      %p297 = scmp.eq.s32.totalorder %s24, 1
      %p298 = por %p296, %p297
      %p300 = scmp.ne.s32.totalorder %s283, %s299
      %p301 = scmp.eq.s32.totalorder %s24, 0
      %p302 = por %p300, %p301
      %p303 = scmp.le.s32.totalorder 1, %s18
      %p304 = scmp.lt.s32.totalorder %s18, 3
      %p305 = pnand %p303, %p304
      %p306 = pneg %p305
      // Predicated region
      $region9: #{_normalizing_flow_forward_impl.1} parent=5 // pred_check
        _
      $region10: #{_normalizing_flow_forward_impl.1} parent=5 // pred_check_branch
        %308 = sbr.rel (%p305) target = $region12
      $region11: #{_normalizing_flow_forward_impl.1} parent=5 // pred_region
        %s309 = ssub.s32 %s18, 1
        // Predicated region
        $region13: #{_normalizing_flow_forward_impl.1} parent=11 // pred_check
          %p310 = pneg %p91
        $region14: #{_normalizing_flow_forward_impl.1} parent=11 // pred_check_branch
          %312 = sbr.rel (%p310) target = $region16
        $region15: #{_normalizing_flow_forward_impl.1} parent=11 // pred_region
          _
        $region16: #{_normalizing_flow_forward_impl.1} parent=11 // pred_fallthru
          _
        // Predicated region
        $region17: #{_normalizing_flow_forward_impl.1} parent=11 // pred_check
          %p313 = pneg %p112
        $region18: #{_normalizing_flow_forward_impl.1} parent=11 // pred_check_branch
          %315 = sbr.rel (%p313) target = $region20
        $region19: #{_normalizing_flow_forward_impl.1} parent=11 // pred_region
          _
        $region20: #{_normalizing_flow_forward_impl.1} parent=11 // pred_fallthru
          _
        // Predicated region
        $region21: #{_normalizing_flow_forward_impl.1} parent=11 // pred_check
          %p316 = pneg %p133
        $region22: #{_normalizing_flow_forward_impl.1} parent=11 // pred_check_branch
          %318 = sbr.rel (%p316) target = $region24
        $region23: #{_normalizing_flow_forward_impl.1} parent=11 // pred_region
          _
        $region24: #{_normalizing_flow_forward_impl.1} parent=11 // pred_fallthru
          _
        // Predicated region
        $region25: #{_normalizing_flow_forward_impl.1} parent=11 // pred_check
          %p319 = pneg %p154
        $region26: #{_normalizing_flow_forward_impl.1} parent=11 // pred_check_branch
          %321 = sbr.rel (%p319) target = $region28
        $region27: #{_normalizing_flow_forward_impl.1} parent=11 // pred_region
          _
        $region28: #{_normalizing_flow_forward_impl.1} parent=11 // pred_fallthru
          _
        // Predicated region
        $region29: #{_normalizing_flow_forward_impl.1} parent=11 // pred_check
          %p322 = pneg %p175
        $region30: #{_normalizing_flow_forward_impl.1} parent=11 // pred_check_branch
          %324 = sbr.rel (%p322) target = $region32
        $region31: #{_normalizing_flow_forward_impl.1} parent=11 // pred_region
          _
        $region32: #{_normalizing_flow_forward_impl.1} parent=11 // pred_fallthru
          _
        // Predicated region
        $region33: #{_normalizing_flow_forward_impl.1} parent=11 // pred_check
          %p325 = pneg %p196
        $region34: #{_normalizing_flow_forward_impl.1} parent=11 // pred_check_branch
          %327 = sbr.rel (%p325) target = $region36
        $region35: #{_normalizing_flow_forward_impl.1} parent=11 // pred_region
          _
        $region36: #{_normalizing_flow_forward_impl.1} parent=11 // pred_fallthru
          _
        // Predicated region
        $region37: #{_normalizing_flow_forward_impl.1} parent=11 // pred_check
          %p328 = pneg %p217
        $region38: #{_normalizing_flow_forward_impl.1} parent=11 // pred_check_branch
          %330 = sbr.rel (%p328) target = $region40
        $region39: #{_normalizing_flow_forward_impl.1} parent=11 // pred_region
          _
        $region40: #{_normalizing_flow_forward_impl.1} parent=11 // pred_fallthru
          _
      $region12: #{_normalizing_flow_forward_impl.1} parent=5 // pred_fallthru
        _
      %p331 = scmp.lt.s32.totalorder %s18, 2
      // Predicated region
      $region41: #{_normalizing_flow_forward_impl.1} parent=5 // pred_check
        %p332 = pneg %p331
      $region42: #{_normalizing_flow_forward_impl.1} parent=5 // pred_check_branch
        %334 = sbr.rel (%p332) target = $region44
      $region43: #{_normalizing_flow_forward_impl.1} parent=5 // pred_region
        // Predicated region
        $region45: #{_normalizing_flow_forward_impl.1} parent=43 // pred_check
          %p335 = pneg %p38
        $region46: #{_normalizing_flow_forward_impl.1} parent=43 // pred_check_branch
          %337 = sbr.rel (%p335) target = $region48
        $region47: #{_normalizing_flow_forward_impl.1} parent=43 // pred_region
          %s338 = smul.u32 2, %s18
          %p339 = scmp.lt.s32.totalorder %s338, 3
          %s340 = scalar_select %p339, %s338, 3
          %s341 = smul.addr %s340, 8
          %s342 = scalar_lea.vmem %s0, %s341
          %s343 = smul.u32 2, %s18
        $region48: #{_normalizing_flow_forward_impl.1} parent=43 // pred_fallthru
          _
        // Predicated region
        $region49: #{_normalizing_flow_forward_impl.1} parent=43 // pred_check
          %p344 = pneg %p64
        $region50: #{_normalizing_flow_forward_impl.1} parent=43 // pred_check_branch
          %346 = sbr.rel (%p344) target = $region52
        $region51: #{_normalizing_flow_forward_impl.1} parent=43 // pred_region
          %s347 = smul.u32 2, %s18
          %p348 = scmp.lt.s32.totalorder %s347, 3
          %s349 = scalar_select %p348, %s347, 3
          %s350 = smul.addr %s349, 4
          %s351 = scalar_lea.vmem %s1, %s350
          %s352 = smul.u32 2, %s18
        $region52: #{_normalizing_flow_forward_impl.1} parent=43 // pred_fallthru
          _
      $region44: #{_normalizing_flow_forward_impl.1} parent=5 // pred_fallthru
        _
      %p353 = scmp.le.s32.totalorder 1, %s18
      %p354 = scmp.lt.s32.totalorder %s18, 3
      %p355 = pnand %p353, %p354
      %p356 = pneg %p355
      // Predicated region
      $region53: #{_normalizing_flow_forward_impl.1} parent=5 // pred_check
        _
      $region54: #{_normalizing_flow_forward_impl.1} parent=5 // pred_check_branch
        %358 = sbr.rel (%p355) target = $region56
      $region55: #{_normalizing_flow_forward_impl.1} parent=5 // pred_region
        %s359 = ssub.s32 %s18, 1
        %s360 = smul.u32 2, %s23
        %p361 = scmp.lt.s32.totalorder %s360, 3
        %s362 = scalar_select %p361, %s360, 3
        %s363 = smul.addr %s362, 8
        %s364 = scalar_lea.vmem %s0, %s363
        %p365 = pneg %p44
        %p366 = pneg %p41
        %s367 = smul.u32 2, %s23
        %p368 = scmp.lt.s32.totalorder %s367, 3
        %s369 = scalar_select %p368, %s367, 3
        %s370 = smul.addr %s369, 4
        %s371 = scalar_lea.vmem %s1, %s370
        %p372 = pneg %p70
        %p373 = pneg %p67
        %p374 = pneg %p91
        %p375 = pneg %p88
        %p376 = pneg %p112
        %p377 = pneg %p109
        %p378 = pneg %p133
        %p379 = pneg %p130
        %p380 = pneg %p154
        %p381 = pneg %p151
        %p382 = pneg %p175
        %p383 = pneg %p172
        %p384 = pneg %p196
        %p385 = pneg %p193
        %p386 = pneg %p217
        %p387 = pneg %p214
        %p388 = pneg %p243
        %p389 = pneg %p240
        %s390 = smul.u32 2, %s23
        %p391 = scmp.lt.s32.totalorder %s390, 3
        %s392 = scalar_select %p391, %s390, 3
        %s393 = smul.addr %s392, 8
        %s394 = scalar_lea.vmem %s9, %s393
        %p395 = pneg %p269
        %p396 = pneg %p266
        %s397 = sand.u32 %s256, 1
        %s398 = sand.u32 %s256, 1
        %s399 = smul.addr %s398, 48
        %s400 = scalar_lea.vmem [#allocation2], %s399
        %p401 = pneg %p295
        %p402 = pneg %p292
        %s403 = smul.u32 2, %s23
        %p404 = scmp.lt.s32.totalorder %s403, 3
        %s405 = scalar_select %p404, %s403, 3
        %s406 = scalar_lea.vmem %s11, %s405
        %s407 = smul.u32 2, %s23
        %p408 = scmp.lt.s32.totalorder %s407, 3
        %s409 = scalar_select %p408, %s407, 3
        %s410 = smul.addr %s409, 8
        %s411 = scalar_lea.vmem %s0, %s410
        %s412 = smul.u32 2, %s23
        %s413 = smul.u32 2, %s23
        %p414 = scmp.lt.s32.totalorder %s413, 3
        %s415 = scalar_select %p414, %s413, 3
        %s416 = smul.addr %s415, 4
        %s417 = scalar_lea.vmem %s1, %s416
        %s418 = smul.u32 2, %s23
        %s419 = smul.u32 2, %s23
        %p420 = scmp.lt.s32.totalorder %s419, 3
        %s421 = scalar_select %p420, %s419, 3
        %s422 = smul.addr %s421, 8
        %s423 = scalar_lea.vmem %s9, %s422
        %s424 = smul.u32 2, %s23
        %s425 = smul.u32 2, %s23
        %s426 = smul.u32 2, %s23
        %p427 = scmp.lt.s32.totalorder %s426, 3
        %s428 = scalar_select %p427, %s426, 3
        %s429 = scalar_lea.vmem %s11, %s428
        %s430 = smul.u32 2, %s23
        %v431 = vld [vmem:[%s2] sm:$0xff]
        %v432 = vld [vmem:[%s2 + $0x8] sm:$0xff]
        %v433 = vld [vmem:[%s2 + $0x10] sm:$0xff]
        %v434 = vld [vmem:[%s2 + $0x18] sm:$0xff]
        %v435 = vld [vmem:[%s5] sm:$0xff]
        %v436 = vld [vmem:[%s5 + $0x8] sm:$0xff]
        %v437 = vld [vmem:[%s5 + $0x10] sm:$0xff]
        %v438 = vld [vmem:[%s5 + $0x18] sm:$0xff]
        %v439 = vld [vmem:[%s7] sm:$0xff]
        %v440 = vld [vmem:[%s6] sm:$0xff]
        %v441 = vld [vmem:[%s6 + $0x8] sm:$0xff]
        %v442 = vld [vmem:[%s6 + $0x10] sm:$0xff]
        %v443 = vld [vmem:[%s6 + $0x18] sm:$0xff]
        %445 = vset.pattern.permute.xlu0 0
        %446 = vperm.xlu0 %445, %v440
        %v447 = vpop.permute.xlu0 %446
        %450 = vset.pattern.permute.xlu0 0
        %451 = vperm.xlu0 %450, %v441
        %v452 = vpop.permute.xlu0 %451
        %455 = vset.pattern.permute.xlu0 0
        %456 = vperm.xlu0 %455, %v442
        %v457 = vpop.permute.xlu0 %456
        %460 = vset.pattern.permute.xlu0 0
        %461 = vperm.xlu0 %460, %v443
        %v462 = vpop.permute.xlu0 %461
        %v464 = vld [vmem:[%s8] sm:$0xff]
        %466 = vset.pattern.permute.xlu0 0
        %467 = vperm.xlu0 %466, %v464
        %v468 = vpop.permute.xlu0 %467
        %v470 = vld [vmem:[%s3] sm:$0xff]
        %v471 = vld [vmem:[%s3 + $0x8] sm:$0xff]
        %v472 = vld [vmem:[%s3 + $0x10] sm:$0xff]
        %v473 = vld [vmem:[%s3 + $0x18] sm:$0xff]
        %v474 = vld [vmem:[%s417] sm:$0xff]
        %v475 = vld [vmem:[%s4] sm:$0xff]
        %v476 = vld [vmem:[%s4 + $0x8] sm:$0xff]
        %v477 = vld [vmem:[%s4 + $0x10] sm:$0xff]
        %v478 = vld [vmem:[%s4 + $0x18] sm:$0xff]
        %480 = vset.pattern.permute.xlu0 0
        %481 = vperm.xlu0 %480, %v475
        %v482 = vpop.permute.xlu0 %481
        %485 = vset.pattern.permute.xlu0 0
        %486 = vperm.xlu0 %485, %v476
        %v487 = vpop.permute.xlu0 %486
        %490 = vset.pattern.permute.xlu0 0
        %491 = vperm.xlu0 %490, %v477
        %v492 = vpop.permute.xlu0 %491
        %495 = vset.pattern.permute.xlu0 0
        %496 = vperm.xlu0 %495, %v478
        %v497 = vpop.permute.xlu0 %496
        %v500 = vcombine.high %v474, %v474
        %vm501 = vcmask 31744
        %v503 = vsel %vm501, %v470, 0
        %v506 = vsel %vm501, %v471, 0
        %v509 = vsel %vm501, %v472, 0
        %v512 = vsel %vm501, %v473, 0
        %vm514 = vcmask 1043456
        %v515 = vsel %vm514, %v474, 0
        %v517 = vsel %vm514, %v500, 0
        %519 = vmatprep.subr.mxu0 0.0
        %520 = vmatpush1.msra.mxu0 0.0
        %521 = vmatprep.subr.mxu0 0.0
        %522 = vmatpush1.msra.mxu0 0.0
        %523 = vmatprep.subr.mxu0 0.0
        %524 = vmatpush1.msra.mxu0 0.0
        %525 = vmatprep.subr.mxu0 0.0
        %526 = vmatpush1.msra.mxu0 0.0
        %527 = vmatprep.subr.mxu0 0.0
        %528 = vmatpush1.msra.mxu0 0.0
        %529 = vmatprep.subr.mxu0 0.0
        %530 = vmatpush1.msra.mxu0 0.0
        %531 = vmatprep.subr.mxu0 0.0
        %532 = vmatpush1.msra.mxu0 0.0
        %533 = vmatprep.subr.mxu0 0.0
        %534 = vmatpush1.msra.mxu0 0.0
        %535 = vmatprep.subr.mxu0 0.0
        %536 = vmatpush1.msra.mxu0 0.0
        %537 = vmatprep.subr.mxu0 0.0
        %538 = vmatpush1.msra.mxu0 0.0
        %539 = vmatprep.subr.mxu0 0.0
        %540 = vmatpush1.msra.mxu0 0.0
        %541 = vmatprep.subr.mxu0 0.0
        %542 = vmatpush1.msra.mxu0 0.0
        %543 = vmatprep.subr.mxu0 0.0
        %544 = vmatpush1.msra.mxu0 0.0
        %545 = vmatprep.subr.mxu0 0.0
        %546 = vmatpush1.msra.mxu0 0.0
        %547 = vmatprep.subr.mxu0 0.0
        %548 = vmatpush1.msra.mxu0 0.0
        %549 = vmatprep.subr.mxu0 %v517
        %550 = vmatpush1.msra.mxu0 %v515
        %551 = vmatprep.subr.mxu0 0.0
        %552 = vmatpush2.msra.mxu0 0.0
        %553 = vmatprep.subr.mxu0 0.0
        %554 = vmatpush2.msra.mxu0 0.0
        %555 = vmatprep.subr.mxu0 0.0
        %556 = vmatpush2.msra.mxu0 0.0
        %557 = vmatprep.subr.mxu0 0.0
        %558 = vmatpush2.msra.mxu0 0.0
        %559 = vmatprep.subr.mxu0 0.0
        %560 = vmatpush2.msra.mxu0 0.0
        %561 = vmatprep.subr.mxu0 0.0
        %562 = vmatpush2.msra.mxu0 0.0
        %563 = vmatprep.subr.mxu0 0.0
        %564 = vmatpush2.msra.mxu0 0.0
        %565 = vmatprep.subr.mxu0 0.0
        %566 = vmatpush2.msra.mxu0 0.0
        %567 = vmatprep.subr.mxu0 0.0
        %568 = vmatpush2.msra.mxu0 0.0
        %569 = vmatprep.subr.mxu0 0.0
        %570 = vmatpush2.msra.mxu0 0.0
        %571 = vmatprep.subr.mxu0 0.0
        %572 = vmatpush2.msra.mxu0 0.0
        %573 = vmatprep.subr.mxu0 0.0
        %574 = vmatpush2.msra.mxu0 0.0
        %575 = vmatprep.subr.mxu0 0.0
        %576 = vmatpush2.msra.mxu0 0.0
        %577 = vmatprep.subr.mxu0 0.0
        %578 = vmatpush2.msra.mxu0 0.0
        %579 = vmatprep.subr.mxu0 0.0
        %580 = vmatpush2.msra.mxu0 0.0
        %581 = vmatprep.subr.mxu0 0.0
        %582 = vmatpush2.msra.mxu0 0.0
        %583 = vmatprep.mubr.f32.mxu0 0.0
        %584 = vmatmul.mubr.f32.gmra.mxu0 %v503
        %v585 = vpop.f32.mrf.mxu0
        %v586 = vadd.f32 %v482, %v585
        %v587 = vpop.f32.mrf.mxu0
        %v588 = vadd.f32 %v482, %v587
        %589 = vmatprep.mubr.f32.mxu0 0.0
        %590 = vmatmul.mubr.f32.gmra.mxu0 %v506
        %v591 = vpop.f32.mrf.mxu0
        %v592 = vadd.f32 %v487, %v591
        %v593 = vpop.f32.mrf.mxu0
        %v594 = vadd.f32 %v487, %v593
        %595 = vmatprep.mubr.f32.mxu0 0.0
        %596 = vmatmul.mubr.f32.gmra.mxu0 %v509
        %v597 = vpop.f32.mrf.mxu0
        %v598 = vadd.f32 %v492, %v597
        %v599 = vpop.f32.mrf.mxu0
        %v600 = vadd.f32 %v492, %v599
        %601 = vmatprep.mubr.f32.mxu0 0.0
        %602 = vmatmul.mubr.f32.gmra.mxu0 %v512
        %v603 = vpop.f32.mrf.mxu0
        %v604 = vadd.f32 %v497, %v603
        %v605 = vpop.f32.mrf.mxu0
        %v606 = vadd.f32 %v497, %v605
        %607 = vdwg.mxu0
        %v608 = vld [vmem:[%s411] sm:$0xff]
        %v609 = vld [vmem:[%s411 + $0x8] sm:$0xff]
        %v611 = vsel %vm501, %v431, 0
        %v614 = vsel %vm501, %v432, 0
        %v617 = vsel %vm501, %v433, 0
        %v620 = vsel %vm501, %v434, 0
        %v623 = vsel %vm514, %v608, 0
        %v626 = vsel %vm514, %v609, 0
        %628 = vmatprep.subr.mxu0 0.0
        %629 = vmatpush1.msra.mxu0 0.0
        %630 = vmatprep.subr.mxu0 0.0
        %631 = vmatpush1.msra.mxu0 0.0
        %632 = vmatprep.subr.mxu0 0.0
        %633 = vmatpush1.msra.mxu0 0.0
        %634 = vmatprep.subr.mxu0 0.0
        %635 = vmatpush1.msra.mxu0 0.0
        %636 = vmatprep.subr.mxu0 0.0
        %637 = vmatpush1.msra.mxu0 0.0
        %638 = vmatprep.subr.mxu0 0.0
        %639 = vmatpush1.msra.mxu0 0.0
        %640 = vmatprep.subr.mxu0 0.0
        %641 = vmatpush1.msra.mxu0 0.0
        %642 = vmatprep.subr.mxu0 0.0
        %643 = vmatpush1.msra.mxu0 0.0
        %644 = vmatprep.subr.mxu0 0.0
        %645 = vmatpush1.msra.mxu0 0.0
        %646 = vmatprep.subr.mxu0 0.0
        %647 = vmatpush1.msra.mxu0 0.0
        %648 = vmatprep.subr.mxu0 0.0
        %649 = vmatpush1.msra.mxu0 0.0
        %650 = vmatprep.subr.mxu0 0.0
        %651 = vmatpush1.msra.mxu0 0.0
        %652 = vmatprep.subr.mxu0 0.0
        %653 = vmatpush1.msra.mxu0 0.0
        %654 = vmatprep.subr.mxu0 0.0
        %655 = vmatpush1.msra.mxu0 0.0
        %656 = vmatprep.subr.mxu0 0.0
        %657 = vmatpush1.msra.mxu0 0.0
        %658 = vmatprep.subr.mxu0 %v626
        %659 = vmatpush1.msra.mxu0 %v623
        %660 = vmatprep.subr.mxu0 0.0
        %661 = vmatpush2.msra.mxu0 0.0
        %662 = vmatprep.subr.mxu0 0.0
        %663 = vmatpush2.msra.mxu0 0.0
        %664 = vmatprep.subr.mxu0 0.0
        %665 = vmatpush2.msra.mxu0 0.0
        %666 = vmatprep.subr.mxu0 0.0
        %667 = vmatpush2.msra.mxu0 0.0
        %668 = vmatprep.subr.mxu0 0.0
        %669 = vmatpush2.msra.mxu0 0.0
        %670 = vmatprep.subr.mxu0 0.0
        %671 = vmatpush2.msra.mxu0 0.0
        %672 = vmatprep.subr.mxu0 0.0
        %673 = vmatpush2.msra.mxu0 0.0
        %674 = vmatprep.subr.mxu0 0.0
        %675 = vmatpush2.msra.mxu0 0.0
        %676 = vmatprep.subr.mxu0 0.0
        %677 = vmatpush2.msra.mxu0 0.0
        %678 = vmatprep.subr.mxu0 0.0
        %679 = vmatpush2.msra.mxu0 0.0
        %680 = vmatprep.subr.mxu0 0.0
        %681 = vmatpush2.msra.mxu0 0.0
        %682 = vmatprep.subr.mxu0 0.0
        %683 = vmatpush2.msra.mxu0 0.0
        %684 = vmatprep.subr.mxu0 0.0
        %685 = vmatpush2.msra.mxu0 0.0
        %686 = vmatprep.subr.mxu0 0.0
        %687 = vmatpush2.msra.mxu0 0.0
        %688 = vmatprep.subr.mxu0 0.0
        %689 = vmatpush2.msra.mxu0 0.0
        %690 = vmatprep.subr.mxu0 0.0
        %691 = vmatpush2.msra.mxu0 0.0
        %692 = vmatprep.mubr.f32.mxu0 0.0
        %693 = vmatmul.mubr.f32.gmra.mxu0 %v611
        %v694 = vpop.f32.mrf.mxu0
        %v695 = vadd.f32 %v586, %v694
        %v696 = vpop.f32.mrf.mxu0
        %v697 = vadd.f32 %v588, %v696
        %698 = vmatprep.mubr.f32.mxu0 0.0
        %699 = vmatmul.mubr.f32.gmra.mxu0 %v614
        %v700 = vpop.f32.mrf.mxu0
        %v701 = vadd.f32 %v592, %v700
        %v702 = vpop.f32.mrf.mxu0
        %v703 = vadd.f32 %v594, %v702
        %704 = vmatprep.mubr.f32.mxu0 0.0
        %705 = vmatmul.mubr.f32.gmra.mxu0 %v617
        %v706 = vpop.f32.mrf.mxu0
        %v707 = vadd.f32 %v598, %v706
        %v708 = vpop.f32.mrf.mxu0
        %v709 = vadd.f32 %v600, %v708
        %710 = vmatprep.mubr.f32.mxu0 0.0
        %711 = vmatmul.mubr.f32.gmra.mxu0 %v620
        %v712 = vpop.f32.mrf.mxu0
        %v713 = vadd.f32 %v604, %v712
        %v714 = vpop.f32.mrf.mxu0
        %v715 = vadd.f32 %v606, %v714
        %716 = vdwg.mxu0
        %v717 = vmax.f32 %v695, 0.0
        %v718 = vmax.f32 %v697, 0.0
        %v719 = vmax.f32 %v701, 0.0
        %v720 = vmax.f32 %v703, 0.0
        %v721 = vmax.f32 %v707, 0.0
        %v722 = vmax.f32 %v709, 0.0
        %v723 = vmax.f32 %v713, 0.0
        %v724 = vmax.f32 %v715, 0.0
        %vm725 = vcmask 261120
        %v727 = vsel %vm725, %v435, 0
        %v730 = vsel %vm725, %v436, 0
        %v733 = vsel %vm725, %v437, 0
        %v736 = vsel %vm725, %v438, 0
        %738 = vmatprep.subr.mxu0 0.0
        %739 = vmatpush1.msra.mxu0 0.0
        %740 = vmatprep.subr.mxu0 0.0
        %741 = vmatpush1.msra.mxu0 0.0
        %742 = vmatprep.subr.mxu0 0.0
        %743 = vmatpush1.msra.mxu0 0.0
        %744 = vmatprep.subr.mxu0 0.0
        %745 = vmatpush1.msra.mxu0 0.0
        %746 = vmatprep.subr.mxu0 0.0
        %747 = vmatpush1.msra.mxu0 0.0
        %748 = vmatprep.subr.mxu0 0.0
        %749 = vmatpush1.msra.mxu0 0.0
        %750 = vmatprep.subr.mxu0 0.0
        %751 = vmatpush1.msra.mxu0 0.0
        %752 = vmatprep.subr.mxu0 0.0
        %753 = vmatpush1.msra.mxu0 0.0
        %754 = vmatprep.subr.mxu0 0.0
        %755 = vmatpush1.msra.mxu0 0.0
        %756 = vmatprep.subr.mxu0 0.0
        %757 = vmatpush1.msra.mxu0 0.0
        %758 = vmatprep.subr.mxu0 0.0
        %759 = vmatpush1.msra.mxu0 0.0
        %760 = vmatprep.subr.mxu0 0.0
        %761 = vmatpush1.msra.mxu0 0.0
        %762 = vmatprep.subr.mxu0 %v724
        %763 = vmatpush1.msra.mxu0 %v723
        %764 = vmatprep.subr.mxu0 %v722
        %765 = vmatpush1.msra.mxu0 %v721
        %766 = vmatprep.subr.mxu0 %v720
        %767 = vmatpush1.msra.mxu0 %v719
        %768 = vmatprep.subr.mxu0 %v718
        %769 = vmatpush1.msra.mxu0 %v717
        %770 = vmatprep.subr.mxu0 0.0
        %771 = vmatpush2.msra.mxu0 0.0
        %772 = vmatprep.subr.mxu0 0.0
        %773 = vmatpush2.msra.mxu0 0.0
        %774 = vmatprep.subr.mxu0 0.0
        %775 = vmatpush2.msra.mxu0 0.0
        %776 = vmatprep.subr.mxu0 0.0
        %777 = vmatpush2.msra.mxu0 0.0
        %778 = vmatprep.subr.mxu0 0.0
        %779 = vmatpush2.msra.mxu0 0.0
        %780 = vmatprep.subr.mxu0 0.0
        %781 = vmatpush2.msra.mxu0 0.0
        %782 = vmatprep.subr.mxu0 0.0
        %783 = vmatpush2.msra.mxu0 0.0
        %784 = vmatprep.subr.mxu0 0.0
        %785 = vmatpush2.msra.mxu0 0.0
        %786 = vmatprep.subr.mxu0 0.0
        %787 = vmatpush2.msra.mxu0 0.0
        %788 = vmatprep.subr.mxu0 0.0
        %789 = vmatpush2.msra.mxu0 0.0
        %790 = vmatprep.subr.mxu0 0.0
        %791 = vmatpush2.msra.mxu0 0.0
        %792 = vmatprep.subr.mxu0 0.0
        %793 = vmatpush2.msra.mxu0 0.0
        %794 = vmatprep.subr.mxu0 0.0
        %795 = vmatpush2.msra.mxu0 0.0
        %796 = vmatprep.subr.mxu0 0.0
        %797 = vmatpush2.msra.mxu0 0.0
        %798 = vmatprep.subr.mxu0 0.0
        %799 = vmatpush2.msra.mxu0 0.0
        %800 = vmatprep.subr.mxu0 0.0
        %801 = vmatpush2.msra.mxu0 0.0
        %802 = vmatprep.mubr.f32.mxu0 0.0
        %803 = vmatmul.mubr.f32.gmra.mxu0 %v727
        %v804 = vpop.f32.mrf.mxu0
        %v805 = vadd.f32 %v447, %v804
        %v806 = vpop.f32.mrf.mxu0
        %v807 = vadd.f32 %v447, %v806
        %808 = vmatprep.mubr.f32.mxu0 0.0
        %809 = vmatmul.mubr.f32.gmra.mxu0 %v730
        %v810 = vpop.f32.mrf.mxu0
        %v811 = vadd.f32 %v452, %v810
        %v812 = vpop.f32.mrf.mxu0
        %v813 = vadd.f32 %v452, %v812
        %814 = vmatprep.mubr.f32.mxu0 0.0
        %815 = vmatmul.mubr.f32.gmra.mxu0 %v733
        %v816 = vpop.f32.mrf.mxu0
        %v817 = vadd.f32 %v457, %v816
        %v818 = vpop.f32.mrf.mxu0
        %v819 = vadd.f32 %v457, %v818
        %820 = vmatprep.mubr.f32.mxu0 0.0
        %821 = vmatmul.mubr.f32.gmra.mxu0 %v736
        %v822 = vpop.f32.mrf.mxu0
        %v823 = vadd.f32 %v462, %v822
        %v824 = vpop.f32.mrf.mxu0
        %v825 = vadd.f32 %v462, %v824
        %826 = vdwg.mxu0
        %v827 = vmax.f32 %v805, 0.0
        %v828 = vmax.f32 %v807, 0.0
        %v829 = vmax.f32 %v811, 0.0
        %v830 = vmax.f32 %v813, 0.0
        %v831 = vmax.f32 %v817, 0.0
        %v832 = vmax.f32 %v819, 0.0
        %v833 = vmax.f32 %v823, 0.0
        %v834 = vmax.f32 %v825, 0.0
        %v836 = vsel %vm725, %v439, 0
        %838 = vmatprep.subr.mxu0 0.0
        %839 = vmatpush1.msra.mxu0 0.0
        %840 = vmatprep.subr.mxu0 0.0
        %841 = vmatpush1.msra.mxu0 0.0
        %842 = vmatprep.subr.mxu0 0.0
        %843 = vmatpush1.msra.mxu0 0.0
        %844 = vmatprep.subr.mxu0 0.0
        %845 = vmatpush1.msra.mxu0 0.0
        %846 = vmatprep.subr.mxu0 0.0
        %847 = vmatpush1.msra.mxu0 0.0
        %848 = vmatprep.subr.mxu0 0.0
        %849 = vmatpush1.msra.mxu0 0.0
        %850 = vmatprep.subr.mxu0 0.0
        %851 = vmatpush1.msra.mxu0 0.0
        %852 = vmatprep.subr.mxu0 0.0
        %853 = vmatpush1.msra.mxu0 0.0
        %854 = vmatprep.subr.mxu0 0.0
        %855 = vmatpush1.msra.mxu0 0.0
        %856 = vmatprep.subr.mxu0 0.0
        %857 = vmatpush1.msra.mxu0 0.0
        %858 = vmatprep.subr.mxu0 0.0
        %859 = vmatpush1.msra.mxu0 0.0
        %860 = vmatprep.subr.mxu0 0.0
        %861 = vmatpush1.msra.mxu0 0.0
        %862 = vmatprep.subr.mxu0 %v834
        %863 = vmatpush1.msra.mxu0 %v833
        %864 = vmatprep.subr.mxu0 %v832
        %865 = vmatpush1.msra.mxu0 %v831
        %866 = vmatprep.subr.mxu0 %v830
        %867 = vmatpush1.msra.mxu0 %v829
        %868 = vmatprep.subr.mxu0 %v828
        %869 = vmatpush1.msra.mxu0 %v827
        %870 = vmatprep.subr.mxu0 0.0
        %871 = vmatpush2.msra.mxu0 0.0
        %872 = vmatprep.subr.mxu0 0.0
        %873 = vmatpush2.msra.mxu0 0.0
        %874 = vmatprep.subr.mxu0 0.0
        %875 = vmatpush2.msra.mxu0 0.0
        %876 = vmatprep.subr.mxu0 0.0
        %877 = vmatpush2.msra.mxu0 0.0
        %878 = vmatprep.subr.mxu0 0.0
        %879 = vmatpush2.msra.mxu0 0.0
        %880 = vmatprep.subr.mxu0 0.0
        %881 = vmatpush2.msra.mxu0 0.0
        %882 = vmatprep.subr.mxu0 0.0
        %883 = vmatpush2.msra.mxu0 0.0
        %884 = vmatprep.subr.mxu0 0.0
        %885 = vmatpush2.msra.mxu0 0.0
        %886 = vmatprep.subr.mxu0 0.0
        %887 = vmatpush2.msra.mxu0 0.0
        %888 = vmatprep.subr.mxu0 0.0
        %889 = vmatpush2.msra.mxu0 0.0
        %890 = vmatprep.subr.mxu0 0.0
        %891 = vmatpush2.msra.mxu0 0.0
        %892 = vmatprep.subr.mxu0 0.0
        %893 = vmatpush2.msra.mxu0 0.0
        %894 = vmatprep.subr.mxu0 0.0
        %895 = vmatpush2.msra.mxu0 0.0
        %896 = vmatprep.subr.mxu0 0.0
        %897 = vmatpush2.msra.mxu0 0.0
        %898 = vmatprep.subr.mxu0 0.0
        %899 = vmatpush2.msra.mxu0 0.0
        %900 = vmatprep.subr.mxu0 0.0
        %901 = vmatpush2.msra.mxu0 0.0
        %902 = vmatprep.mubr.f32.mxu0 0.0
        %903 = vmatmul.mubr.f32.gmra.mxu0 %v836
        %v904 = vpop.f32.mrf.mxu0
        %v905 = vadd.f32 %v468, %v904
        %v906 = vpop.f32.mrf.mxu0
        %v907 = vadd.f32 %v468, %v906
        %908 = vdwg.mxu0
        %909 = vst [vmem:[%s400] sm:$0xff] %v905
        %910 = vst [vmem:[%s400 + $0x8] sm:$0xff] %v907
        %v911 = vmul.f32 %v905, 1.442695
        %v912 = vpow.pop %v911
        %v913 = vmul.f32 %v907, 1.442695
        %v914 = vpow.pop %v913
        %v917 = vrot.slane %v912, 4
        %v918 = vrot.slane %v914, 4
        %v921 = vmul.f32 %v608, %v917
        %v922 = vmul.f32 %v609, %v918
        %v923 = vadd.f32 %v921, %v905
        %v924 = vadd.f32 %v922, %v907
        %v925 = vrot.slane %v608, 2
        %v926 = vrot.slane %v609, 2
        %v931 = vrot.slane %v923, 3
        %v932 = vrot.slane %v924, 3
        %v935 = vrot.slane %v608, 1
        %v936 = vrot.slane %v609, 1
        %v939 = vrot.slane %v923, 1
        %v940 = vrot.slane %v924, 1
        %v943 = vrot.slane %v608, 3
        %v944 = vrot.slane %v609, 3
        %vm947 = vcmask 1040384
        %v948 = vsel %vm947, %v925, %v931
        %v949 = vsel %vm947, %v926, %v932
        %vm950 = vcmask 1041408
        %v951 = vsel %vm950, %v948, %v935
        %v952 = vsel %vm950, %v949, %v936
        %vm953 = vcmask 1042432
        %v954 = vsel %vm953, %v951, %v931
        %v955 = vsel %vm953, %v952, %v932
        %v956 = vsel %vm514, %v954, %v939
        %v957 = vsel %vm514, %v955, %v940
        %vm958 = vcmask 1044480
        %v959 = vsel %vm958, %v956, %v943
        %v960 = vsel %vm958, %v957, %v944
        %vm961 = vcmask 1045504
        %v962 = vsel %vm961, %v959, %v943
        %v963 = vsel %vm961, %v960, %v944
        %vm964 = vcmask 1046528
        %v965 = vsel %vm964, %v962, %v923
        %v966 = vsel %vm964, %v963, %v924
        %v968 = vsel %vm514, %v965, 0
        %v971 = vsel %vm514, %v966, 0
        %973 = vmatprep.subr.mxu0 0.0
        %974 = vmatpush1.msra.mxu0 0.0
        %975 = vmatprep.subr.mxu0 0.0
        %976 = vmatpush1.msra.mxu0 0.0
        %977 = vmatprep.subr.mxu0 0.0
        %978 = vmatpush1.msra.mxu0 0.0
        %979 = vmatprep.subr.mxu0 0.0
        %980 = vmatpush1.msra.mxu0 0.0
        %981 = vmatprep.subr.mxu0 0.0
        %982 = vmatpush1.msra.mxu0 0.0
        %983 = vmatprep.subr.mxu0 0.0
        %984 = vmatpush1.msra.mxu0 0.0
        %985 = vmatprep.subr.mxu0 0.0
        %986 = vmatpush1.msra.mxu0 0.0
        %987 = vmatprep.subr.mxu0 0.0
        %988 = vmatpush1.msra.mxu0 0.0
        %989 = vmatprep.subr.mxu0 0.0
        %990 = vmatpush1.msra.mxu0 0.0
        %991 = vmatprep.subr.mxu0 0.0
        %992 = vmatpush1.msra.mxu0 0.0
        %993 = vmatprep.subr.mxu0 0.0
        %994 = vmatpush1.msra.mxu0 0.0
        %995 = vmatprep.subr.mxu0 0.0
        %996 = vmatpush1.msra.mxu0 0.0
        %997 = vmatprep.subr.mxu0 0.0
        %998 = vmatpush1.msra.mxu0 0.0
        %999 = vmatprep.subr.mxu0 0.0
        %1000 = vmatpush1.msra.mxu0 0.0
        %1001 = vmatprep.subr.mxu0 0.0
        %1002 = vmatpush1.msra.mxu0 0.0
        %1003 = vmatprep.subr.mxu0 %v971
        %1004 = vmatpush1.msra.mxu0 %v968
        %1005 = vmatprep.subr.mxu0 0.0
        %1006 = vmatpush2.msra.mxu0 0.0
        %1007 = vmatprep.subr.mxu0 0.0
        %1008 = vmatpush2.msra.mxu0 0.0
        %1009 = vmatprep.subr.mxu0 0.0
        %1010 = vmatpush2.msra.mxu0 0.0
        %1011 = vmatprep.subr.mxu0 0.0
        %1012 = vmatpush2.msra.mxu0 0.0
        %1013 = vmatprep.subr.mxu0 0.0
        %1014 = vmatpush2.msra.mxu0 0.0
        %1015 = vmatprep.subr.mxu0 0.0
        %1016 = vmatpush2.msra.mxu0 0.0
        %1017 = vmatprep.subr.mxu0 0.0
        %1018 = vmatpush2.msra.mxu0 0.0
        %1019 = vmatprep.subr.mxu0 0.0
        %1020 = vmatpush2.msra.mxu0 0.0
        %1021 = vmatprep.subr.mxu0 0.0
        %1022 = vmatpush2.msra.mxu0 0.0
        %1023 = vmatprep.subr.mxu0 0.0
        %1024 = vmatpush2.msra.mxu0 0.0
        %1025 = vmatprep.subr.mxu0 0.0
        %1026 = vmatpush2.msra.mxu0 0.0
        %1027 = vmatprep.subr.mxu0 0.0
        %1028 = vmatpush2.msra.mxu0 0.0
        %1029 = vmatprep.subr.mxu0 0.0
        %1030 = vmatpush2.msra.mxu0 0.0
        %1031 = vmatprep.subr.mxu0 0.0
        %1032 = vmatpush2.msra.mxu0 0.0
        %1033 = vmatprep.subr.mxu0 0.0
        %1034 = vmatpush2.msra.mxu0 0.0
        %1035 = vmatprep.subr.mxu0 0.0
        %1036 = vmatpush2.msra.mxu0 0.0
        %1037 = vmatprep.mubr.f32.mxu0 0.0
        %1038 = vmatmul.mubr.f32.gmra.mxu0 %v611
        %v1039 = vpop.f32.mrf.mxu0
        %v1040 = vadd.f32 %v586, %v1039
        %v1041 = vpop.f32.mrf.mxu0
        %v1042 = vadd.f32 %v588, %v1041
        %1043 = vmatprep.mubr.f32.mxu0 0.0
        %1044 = vmatmul.mubr.f32.gmra.mxu0 %v614
        %v1045 = vpop.f32.mrf.mxu0
        %v1046 = vadd.f32 %v592, %v1045
        %v1047 = vpop.f32.mrf.mxu0
        %v1048 = vadd.f32 %v594, %v1047
        %1049 = vmatprep.mubr.f32.mxu0 0.0
        %1050 = vmatmul.mubr.f32.gmra.mxu0 %v617
        %v1051 = vpop.f32.mrf.mxu0
        %v1052 = vadd.f32 %v598, %v1051
        %v1053 = vpop.f32.mrf.mxu0
        %v1054 = vadd.f32 %v600, %v1053
        %1055 = vmatprep.mubr.f32.mxu0 0.0
        %1056 = vmatmul.mubr.f32.gmra.mxu0 %v620
        %v1057 = vpop.f32.mrf.mxu0
        %v1058 = vadd.f32 %v604, %v1057
        %v1059 = vpop.f32.mrf.mxu0
        %v1060 = vadd.f32 %v606, %v1059
        %1061 = vdwg.mxu0
        %v1062 = vmax.f32 %v1040, 0.0
        %v1063 = vmax.f32 %v1042, 0.0
        %v1064 = vmax.f32 %v1046, 0.0
        %v1065 = vmax.f32 %v1048, 0.0
        %v1066 = vmax.f32 %v1052, 0.0
        %v1067 = vmax.f32 %v1054, 0.0
        %v1068 = vmax.f32 %v1058, 0.0
        %v1069 = vmax.f32 %v1060, 0.0
        %1070 = vmatprep.subr.mxu0 0.0
        %1071 = vmatpush1.msra.mxu0 0.0
        %1072 = vmatprep.subr.mxu0 0.0
        %1073 = vmatpush1.msra.mxu0 0.0
        %1074 = vmatprep.subr.mxu0 0.0
        %1075 = vmatpush1.msra.mxu0 0.0
        %1076 = vmatprep.subr.mxu0 0.0
        %1077 = vmatpush1.msra.mxu0 0.0
        %1078 = vmatprep.subr.mxu0 0.0
        %1079 = vmatpush1.msra.mxu0 0.0
        %1080 = vmatprep.subr.mxu0 0.0
        %1081 = vmatpush1.msra.mxu0 0.0
        %1082 = vmatprep.subr.mxu0 0.0
        %1083 = vmatpush1.msra.mxu0 0.0
        %1084 = vmatprep.subr.mxu0 0.0
        %1085 = vmatpush1.msra.mxu0 0.0
        %1086 = vmatprep.subr.mxu0 0.0
        %1087 = vmatpush1.msra.mxu0 0.0
        %1088 = vmatprep.subr.mxu0 0.0
        %1089 = vmatpush1.msra.mxu0 0.0
        %1090 = vmatprep.subr.mxu0 0.0
        %1091 = vmatpush1.msra.mxu0 0.0
        %1092 = vmatprep.subr.mxu0 0.0
        %1093 = vmatpush1.msra.mxu0 0.0
        %1094 = vmatprep.subr.mxu0 %v1069
        %1095 = vmatpush1.msra.mxu0 %v1068
        %1096 = vmatprep.subr.mxu0 %v1067
        %1097 = vmatpush1.msra.mxu0 %v1066
        %1098 = vmatprep.subr.mxu0 %v1065
        %1099 = vmatpush1.msra.mxu0 %v1064
        %1100 = vmatprep.subr.mxu0 %v1063
        %1101 = vmatpush1.msra.mxu0 %v1062
        %1102 = vmatprep.subr.mxu0 0.0
        %1103 = vmatpush2.msra.mxu0 0.0
        %1104 = vmatprep.subr.mxu0 0.0
        %1105 = vmatpush2.msra.mxu0 0.0
        %1106 = vmatprep.subr.mxu0 0.0
        %1107 = vmatpush2.msra.mxu0 0.0
        %1108 = vmatprep.subr.mxu0 0.0
        %1109 = vmatpush2.msra.mxu0 0.0
        %1110 = vmatprep.subr.mxu0 0.0
        %1111 = vmatpush2.msra.mxu0 0.0
        %1112 = vmatprep.subr.mxu0 0.0
        %1113 = vmatpush2.msra.mxu0 0.0
        %1114 = vmatprep.subr.mxu0 0.0
        %1115 = vmatpush2.msra.mxu0 0.0
        %1116 = vmatprep.subr.mxu0 0.0
        %1117 = vmatpush2.msra.mxu0 0.0
        %1118 = vmatprep.subr.mxu0 0.0
        %1119 = vmatpush2.msra.mxu0 0.0
        %1120 = vmatprep.subr.mxu0 0.0
        %1121 = vmatpush2.msra.mxu0 0.0
        %1122 = vmatprep.subr.mxu0 0.0
        %1123 = vmatpush2.msra.mxu0 0.0
        %1124 = vmatprep.subr.mxu0 0.0
        %1125 = vmatpush2.msra.mxu0 0.0
        %1126 = vmatprep.subr.mxu0 0.0
        %1127 = vmatpush2.msra.mxu0 0.0
        %1128 = vmatprep.subr.mxu0 0.0
        %1129 = vmatpush2.msra.mxu0 0.0
        %1130 = vmatprep.subr.mxu0 0.0
        %1131 = vmatpush2.msra.mxu0 0.0
        %1132 = vmatprep.subr.mxu0 0.0
        %1133 = vmatpush2.msra.mxu0 0.0
        %1134 = vmatprep.mubr.f32.mxu0 0.0
        %1135 = vmatmul.mubr.f32.gmra.mxu0 %v727
        %v1136 = vpop.f32.mrf.mxu0
        %v1137 = vadd.f32 %v447, %v1136
        %v1138 = vpop.f32.mrf.mxu0
        %v1139 = vadd.f32 %v447, %v1138
        %1140 = vmatprep.mubr.f32.mxu0 0.0
        %1141 = vmatmul.mubr.f32.gmra.mxu0 %v730
        %v1142 = vpop.f32.mrf.mxu0
        %v1143 = vadd.f32 %v452, %v1142
        %v1144 = vpop.f32.mrf.mxu0
        %v1145 = vadd.f32 %v452, %v1144
        %1146 = vmatprep.mubr.f32.mxu0 0.0
        %1147 = vmatmul.mubr.f32.gmra.mxu0 %v733
        %v1148 = vpop.f32.mrf.mxu0
        %v1149 = vadd.f32 %v457, %v1148
        %v1150 = vpop.f32.mrf.mxu0
        %v1151 = vadd.f32 %v457, %v1150
        %1152 = vmatprep.mubr.f32.mxu0 0.0
        %1153 = vmatmul.mubr.f32.gmra.mxu0 %v736
        %v1154 = vpop.f32.mrf.mxu0
        %v1155 = vadd.f32 %v462, %v1154
        %v1156 = vpop.f32.mrf.mxu0
        %v1157 = vadd.f32 %v462, %v1156
        %1158 = vdwg.mxu0
        %v1159 = vmax.f32 %v1137, 0.0
        %v1160 = vmax.f32 %v1139, 0.0
        %v1161 = vmax.f32 %v1143, 0.0
        %v1162 = vmax.f32 %v1145, 0.0
        %v1163 = vmax.f32 %v1149, 0.0
        %v1164 = vmax.f32 %v1151, 0.0
        %v1165 = vmax.f32 %v1155, 0.0
        %v1166 = vmax.f32 %v1157, 0.0
        %1167 = vmatprep.subr.mxu0 0.0
        %1168 = vmatpush1.msra.mxu0 0.0
        %1169 = vmatprep.subr.mxu0 0.0
        %1170 = vmatpush1.msra.mxu0 0.0
        %1171 = vmatprep.subr.mxu0 0.0
        %1172 = vmatpush1.msra.mxu0 0.0
        %1173 = vmatprep.subr.mxu0 0.0
        %1174 = vmatpush1.msra.mxu0 0.0
        %1175 = vmatprep.subr.mxu0 0.0
        %1176 = vmatpush1.msra.mxu0 0.0
        %1177 = vmatprep.subr.mxu0 0.0
        %1178 = vmatpush1.msra.mxu0 0.0
        %1179 = vmatprep.subr.mxu0 0.0
        %1180 = vmatpush1.msra.mxu0 0.0
        %1181 = vmatprep.subr.mxu0 0.0
        %1182 = vmatpush1.msra.mxu0 0.0
        %1183 = vmatprep.subr.mxu0 0.0
        %1184 = vmatpush1.msra.mxu0 0.0
        %1185 = vmatprep.subr.mxu0 0.0
        %1186 = vmatpush1.msra.mxu0 0.0
        %1187 = vmatprep.subr.mxu0 0.0
        %1188 = vmatpush1.msra.mxu0 0.0
        %1189 = vmatprep.subr.mxu0 0.0
        %1190 = vmatpush1.msra.mxu0 0.0
        %1191 = vmatprep.subr.mxu0 %v1166
        %1192 = vmatpush1.msra.mxu0 %v1165
        %1193 = vmatprep.subr.mxu0 %v1164
        %1194 = vmatpush1.msra.mxu0 %v1163
        %1195 = vmatprep.subr.mxu0 %v1162
        %1196 = vmatpush1.msra.mxu0 %v1161
        %1197 = vmatprep.subr.mxu0 %v1160
        %1198 = vmatpush1.msra.mxu0 %v1159
        %1199 = vmatprep.subr.mxu0 0.0
        %1200 = vmatpush2.msra.mxu0 0.0
        %1201 = vmatprep.subr.mxu0 0.0
        %1202 = vmatpush2.msra.mxu0 0.0
        %1203 = vmatprep.subr.mxu0 0.0
        %1204 = vmatpush2.msra.mxu0 0.0
        %1205 = vmatprep.subr.mxu0 0.0
        %1206 = vmatpush2.msra.mxu0 0.0
        %1207 = vmatprep.subr.mxu0 0.0
        %1208 = vmatpush2.msra.mxu0 0.0
        %1209 = vmatprep.subr.mxu0 0.0
        %1210 = vmatpush2.msra.mxu0 0.0
        %1211 = vmatprep.subr.mxu0 0.0
        %1212 = vmatpush2.msra.mxu0 0.0
        %1213 = vmatprep.subr.mxu0 0.0
        %1214 = vmatpush2.msra.mxu0 0.0
        %1215 = vmatprep.subr.mxu0 0.0
        %1216 = vmatpush2.msra.mxu0 0.0
        %1217 = vmatprep.subr.mxu0 0.0
        %1218 = vmatpush2.msra.mxu0 0.0
        %1219 = vmatprep.subr.mxu0 0.0
        %1220 = vmatpush2.msra.mxu0 0.0
        %1221 = vmatprep.subr.mxu0 0.0
        %1222 = vmatpush2.msra.mxu0 0.0
        %1223 = vmatprep.subr.mxu0 0.0
        %1224 = vmatpush2.msra.mxu0 0.0
        %1225 = vmatprep.subr.mxu0 0.0
        %1226 = vmatpush2.msra.mxu0 0.0
        %1227 = vmatprep.subr.mxu0 0.0
        %1228 = vmatpush2.msra.mxu0 0.0
        %1229 = vmatprep.subr.mxu0 0.0
        %1230 = vmatpush2.msra.mxu0 0.0
        %1231 = vmatprep.mubr.f32.mxu0 0.0
        %1232 = vmatmul.mubr.f32.gmra.mxu0 %v836
        %v1233 = vpop.f32.mrf.mxu0
        %v1234 = vadd.f32 %v468, %v1233
        %v1235 = vpop.f32.mrf.mxu0
        %v1236 = vadd.f32 %v468, %v1235
        %1237 = vdwg.mxu0
        %s1238 = scalar_lea.vmem %s400, 16 [#allocation2]
        %1239 = vst [vmem:[%s1238] sm:$0xff] %v1234
        %1240 = vst [vmem:[%s1238 + $0x8] sm:$0xff] %v1236
        %v1241 = vmul.f32 %v1234, 1.442695
        %v1242 = vpow.pop %v1241
        %v1243 = vmul.f32 %v1236, 1.442695
        %v1244 = vpow.pop %v1243
        %v1247 = vrot.slane %v1242, 4
        %v1248 = vrot.slane %v1244, 4
        %v1251 = vmul.f32 %v965, %v1247
        %v1252 = vmul.f32 %v966, %v1248
        %v1253 = vadd.f32 %v1251, %v1234
        %v1254 = vadd.f32 %v1252, %v1236
        %v1257 = vrot.slane %v1253, 5
        %v1258 = vrot.slane %v1254, 5
        %v1261 = vrot.slane %v965, 7
        %v1262 = vrot.slane %v966, 7
        %v1265 = vrot.slane %v1253, 1
        %v1266 = vrot.slane %v1254, 1
        %v1269 = vrot.slane %v965, 6
        %v1270 = vrot.slane %v966, 6
        %v1273 = vrot.slane %v965, 5
        %v1274 = vrot.slane %v966, 5
        %v1277 = vsel %vm947, %v1257, %v1261
        %v1278 = vsel %vm947, %v1258, %v1262
        %v1279 = vsel %vm950, %v1277, %v1261
        %v1280 = vsel %vm950, %v1278, %v1262
        %v1281 = vsel %vm953, %v1279, %v1265
        %v1282 = vsel %vm953, %v1280, %v1266
        %v1283 = vsel %vm514, %v1281, %v1269
        %v1284 = vsel %vm514, %v1282, %v1270
        %v1285 = vsel %vm958, %v1283, %v1265
        %v1286 = vsel %vm958, %v1284, %v1266
        %v1287 = vsel %vm961, %v1285, %v1273
        %v1288 = vsel %vm961, %v1286, %v1274
        %v1289 = vsel %vm964, %v1287, %v1253
        %v1290 = vsel %vm964, %v1288, %v1254
        %v1292 = vsel %vm514, %v1289, 0
        %v1295 = vsel %vm514, %v1290, 0
        %1297 = vmatprep.subr.mxu0 0.0
        %1298 = vmatpush1.msra.mxu0 0.0
        %1299 = vmatprep.subr.mxu0 0.0
        %1300 = vmatpush1.msra.mxu0 0.0
        %1301 = vmatprep.subr.mxu0 0.0
        %1302 = vmatpush1.msra.mxu0 0.0
        %1303 = vmatprep.subr.mxu0 0.0
        %1304 = vmatpush1.msra.mxu0 0.0
        %1305 = vmatprep.subr.mxu0 0.0
        %1306 = vmatpush1.msra.mxu0 0.0
        %1307 = vmatprep.subr.mxu0 0.0
        %1308 = vmatpush1.msra.mxu0 0.0
        %1309 = vmatprep.subr.mxu0 0.0
        %1310 = vmatpush1.msra.mxu0 0.0
        %1311 = vmatprep.subr.mxu0 0.0
        %1312 = vmatpush1.msra.mxu0 0.0
        %1313 = vmatprep.subr.mxu0 0.0
        %1314 = vmatpush1.msra.mxu0 0.0
        %1315 = vmatprep.subr.mxu0 0.0
        %1316 = vmatpush1.msra.mxu0 0.0
        %1317 = vmatprep.subr.mxu0 0.0
        %1318 = vmatpush1.msra.mxu0 0.0
        %1319 = vmatprep.subr.mxu0 0.0
        %1320 = vmatpush1.msra.mxu0 0.0
        %1321 = vmatprep.subr.mxu0 0.0
        %1322 = vmatpush1.msra.mxu0 0.0
        %1323 = vmatprep.subr.mxu0 0.0
        %1324 = vmatpush1.msra.mxu0 0.0
        %1325 = vmatprep.subr.mxu0 0.0
        %1326 = vmatpush1.msra.mxu0 0.0
        %1327 = vmatprep.subr.mxu0 %v1295
        %1328 = vmatpush1.msra.mxu0 %v1292
        %1329 = vmatprep.subr.mxu0 0.0
        %1330 = vmatpush2.msra.mxu0 0.0
        %1331 = vmatprep.subr.mxu0 0.0
        %1332 = vmatpush2.msra.mxu0 0.0
        %1333 = vmatprep.subr.mxu0 0.0
        %1334 = vmatpush2.msra.mxu0 0.0
        %1335 = vmatprep.subr.mxu0 0.0
        %1336 = vmatpush2.msra.mxu0 0.0
        %1337 = vmatprep.subr.mxu0 0.0
        %1338 = vmatpush2.msra.mxu0 0.0
        %1339 = vmatprep.subr.mxu0 0.0
        %1340 = vmatpush2.msra.mxu0 0.0
        %1341 = vmatprep.subr.mxu0 0.0
        %1342 = vmatpush2.msra.mxu0 0.0
        %1343 = vmatprep.subr.mxu0 0.0
        %1344 = vmatpush2.msra.mxu0 0.0
        %1345 = vmatprep.subr.mxu0 0.0
        %1346 = vmatpush2.msra.mxu0 0.0
        %1347 = vmatprep.subr.mxu0 0.0
        %1348 = vmatpush2.msra.mxu0 0.0
        %1349 = vmatprep.subr.mxu0 0.0
        %1350 = vmatpush2.msra.mxu0 0.0
        %1351 = vmatprep.subr.mxu0 0.0
        %1352 = vmatpush2.msra.mxu0 0.0
        %1353 = vmatprep.subr.mxu0 0.0
        %1354 = vmatpush2.msra.mxu0 0.0
        %1355 = vmatprep.subr.mxu0 0.0
        %1356 = vmatpush2.msra.mxu0 0.0
        %1357 = vmatprep.subr.mxu0 0.0
        %1358 = vmatpush2.msra.mxu0 0.0
        %1359 = vmatprep.subr.mxu0 0.0
        %1360 = vmatpush2.msra.mxu0 0.0
        %1361 = vmatprep.mubr.f32.mxu0 0.0
        %1362 = vmatmul.mubr.f32.gmra.mxu0 %v611
        %v1363 = vpop.f32.mrf.mxu0
        %v1364 = vadd.f32 %v586, %v1363
        %v1365 = vpop.f32.mrf.mxu0
        %v1366 = vadd.f32 %v588, %v1365
        %1367 = vmatprep.mubr.f32.mxu0 0.0
        %1368 = vmatmul.mubr.f32.gmra.mxu0 %v614
        %v1369 = vpop.f32.mrf.mxu0
        %v1370 = vadd.f32 %v592, %v1369
        %v1371 = vpop.f32.mrf.mxu0
        %v1372 = vadd.f32 %v594, %v1371
        %1373 = vmatprep.mubr.f32.mxu0 0.0
        %1374 = vmatmul.mubr.f32.gmra.mxu0 %v617
        %v1375 = vpop.f32.mrf.mxu0
        %v1376 = vadd.f32 %v598, %v1375
        %v1377 = vpop.f32.mrf.mxu0
        %v1378 = vadd.f32 %v600, %v1377
        %1379 = vmatprep.mubr.f32.mxu0 0.0
        %1380 = vmatmul.mubr.f32.gmra.mxu0 %v620
        %v1381 = vpop.f32.mrf.mxu0
        %v1382 = vadd.f32 %v604, %v1381
        %v1383 = vpop.f32.mrf.mxu0
        %v1384 = vadd.f32 %v606, %v1383
        %1385 = vdwg.mxu0
        %v1386 = vmax.f32 %v1364, 0.0
        %v1387 = vmax.f32 %v1366, 0.0
        %v1388 = vmax.f32 %v1370, 0.0
        %v1389 = vmax.f32 %v1372, 0.0
        %v1390 = vmax.f32 %v1376, 0.0
        %v1391 = vmax.f32 %v1378, 0.0
        %v1392 = vmax.f32 %v1382, 0.0
        %v1393 = vmax.f32 %v1384, 0.0
        %1394 = vmatprep.subr.mxu0 0.0
        %1395 = vmatpush1.msra.mxu0 0.0
        %1396 = vmatprep.subr.mxu0 0.0
        %1397 = vmatpush1.msra.mxu0 0.0
        %1398 = vmatprep.subr.mxu0 0.0
        %1399 = vmatpush1.msra.mxu0 0.0
        %1400 = vmatprep.subr.mxu0 0.0
        %1401 = vmatpush1.msra.mxu0 0.0
        %1402 = vmatprep.subr.mxu0 0.0
        %1403 = vmatpush1.msra.mxu0 0.0
        %1404 = vmatprep.subr.mxu0 0.0
        %1405 = vmatpush1.msra.mxu0 0.0
        %1406 = vmatprep.subr.mxu0 0.0
        %1407 = vmatpush1.msra.mxu0 0.0
        %1408 = vmatprep.subr.mxu0 0.0
        %1409 = vmatpush1.msra.mxu0 0.0
        %1410 = vmatprep.subr.mxu0 0.0
        %1411 = vmatpush1.msra.mxu0 0.0
        %1412 = vmatprep.subr.mxu0 0.0
        %1413 = vmatpush1.msra.mxu0 0.0
        %1414 = vmatprep.subr.mxu0 0.0
        %1415 = vmatpush1.msra.mxu0 0.0
        %1416 = vmatprep.subr.mxu0 0.0
        %1417 = vmatpush1.msra.mxu0 0.0
        %1418 = vmatprep.subr.mxu0 %v1393
        %1419 = vmatpush1.msra.mxu0 %v1392
        %1420 = vmatprep.subr.mxu0 %v1391
        %1421 = vmatpush1.msra.mxu0 %v1390
        %1422 = vmatprep.subr.mxu0 %v1389
        %1423 = vmatpush1.msra.mxu0 %v1388
        %1424 = vmatprep.subr.mxu0 %v1387
        %1425 = vmatpush1.msra.mxu0 %v1386
        %1426 = vmatprep.subr.mxu0 0.0
        %1427 = vmatpush2.msra.mxu0 0.0
        %1428 = vmatprep.subr.mxu0 0.0
        %1429 = vmatpush2.msra.mxu0 0.0
        %1430 = vmatprep.subr.mxu0 0.0
        %1431 = vmatpush2.msra.mxu0 0.0
        %1432 = vmatprep.subr.mxu0 0.0
        %1433 = vmatpush2.msra.mxu0 0.0
        %1434 = vmatprep.subr.mxu0 0.0
        %1435 = vmatpush2.msra.mxu0 0.0
        %1436 = vmatprep.subr.mxu0 0.0
        %1437 = vmatpush2.msra.mxu0 0.0
        %1438 = vmatprep.subr.mxu0 0.0
        %1439 = vmatpush2.msra.mxu0 0.0
        %1440 = vmatprep.subr.mxu0 0.0
        %1441 = vmatpush2.msra.mxu0 0.0
        %1442 = vmatprep.subr.mxu0 0.0
        %1443 = vmatpush2.msra.mxu0 0.0
        %1444 = vmatprep.subr.mxu0 0.0
        %1445 = vmatpush2.msra.mxu0 0.0
        %1446 = vmatprep.subr.mxu0 0.0
        %1447 = vmatpush2.msra.mxu0 0.0
        %1448 = vmatprep.subr.mxu0 0.0
        %1449 = vmatpush2.msra.mxu0 0.0
        %1450 = vmatprep.subr.mxu0 0.0
        %1451 = vmatpush2.msra.mxu0 0.0
        %1452 = vmatprep.subr.mxu0 0.0
        %1453 = vmatpush2.msra.mxu0 0.0
        %1454 = vmatprep.subr.mxu0 0.0
        %1455 = vmatpush2.msra.mxu0 0.0
        %1456 = vmatprep.subr.mxu0 0.0
        %1457 = vmatpush2.msra.mxu0 0.0
        %1458 = vmatprep.mubr.f32.mxu0 0.0
        %1459 = vmatmul.mubr.f32.gmra.mxu0 %v727
        %v1460 = vpop.f32.mrf.mxu0
        %v1461 = vadd.f32 %v447, %v1460
        %v1462 = vpop.f32.mrf.mxu0
        %v1463 = vadd.f32 %v447, %v1462
        %1464 = vmatprep.mubr.f32.mxu0 0.0
        %1465 = vmatmul.mubr.f32.gmra.mxu0 %v730
        %v1466 = vpop.f32.mrf.mxu0
        %v1467 = vadd.f32 %v452, %v1466
        %v1468 = vpop.f32.mrf.mxu0
        %v1469 = vadd.f32 %v452, %v1468
        %1470 = vmatprep.mubr.f32.mxu0 0.0
        %1471 = vmatmul.mubr.f32.gmra.mxu0 %v733
        %v1472 = vpop.f32.mrf.mxu0
        %v1473 = vadd.f32 %v457, %v1472
        %v1474 = vpop.f32.mrf.mxu0
        %v1475 = vadd.f32 %v457, %v1474
        %1476 = vmatprep.mubr.f32.mxu0 0.0
        %1477 = vmatmul.mubr.f32.gmra.mxu0 %v736
        %v1478 = vpop.f32.mrf.mxu0
        %v1479 = vadd.f32 %v462, %v1478
        %v1480 = vpop.f32.mrf.mxu0
        %v1481 = vadd.f32 %v462, %v1480
        %1482 = vdwg.mxu0
        %v1483 = vmax.f32 %v1461, 0.0
        %v1484 = vmax.f32 %v1463, 0.0
        %v1485 = vmax.f32 %v1467, 0.0
        %v1486 = vmax.f32 %v1469, 0.0
        %v1487 = vmax.f32 %v1473, 0.0
        %v1488 = vmax.f32 %v1475, 0.0
        %v1489 = vmax.f32 %v1479, 0.0
        %v1490 = vmax.f32 %v1481, 0.0
        %1491 = vmatprep.subr.mxu0 0.0
        %1492 = vmatpush1.msra.mxu0 0.0
        %1493 = vmatprep.subr.mxu0 0.0
        %1494 = vmatpush1.msra.mxu0 0.0
        %1495 = vmatprep.subr.mxu0 0.0
        %1496 = vmatpush1.msra.mxu0 0.0
        %1497 = vmatprep.subr.mxu0 0.0
        %1498 = vmatpush1.msra.mxu0 0.0
        %1499 = vmatprep.subr.mxu0 0.0
        %1500 = vmatpush1.msra.mxu0 0.0
        %1501 = vmatprep.subr.mxu0 0.0
        %1502 = vmatpush1.msra.mxu0 0.0
        %1503 = vmatprep.subr.mxu0 0.0
        %1504 = vmatpush1.msra.mxu0 0.0
        %1505 = vmatprep.subr.mxu0 0.0
        %1506 = vmatpush1.msra.mxu0 0.0
        %1507 = vmatprep.subr.mxu0 0.0
        %1508 = vmatpush1.msra.mxu0 0.0
        %1509 = vmatprep.subr.mxu0 0.0
        %1510 = vmatpush1.msra.mxu0 0.0
        %1511 = vmatprep.subr.mxu0 0.0
        %1512 = vmatpush1.msra.mxu0 0.0
        %1513 = vmatprep.subr.mxu0 0.0
        %1514 = vmatpush1.msra.mxu0 0.0
        %1515 = vmatprep.subr.mxu0 %v1490
        %1516 = vmatpush1.msra.mxu0 %v1489
        %1517 = vmatprep.subr.mxu0 %v1488
        %1518 = vmatpush1.msra.mxu0 %v1487
        %1519 = vmatprep.subr.mxu0 %v1486
        %1520 = vmatpush1.msra.mxu0 %v1485
        %1521 = vmatprep.subr.mxu0 %v1484
        %1522 = vmatpush1.msra.mxu0 %v1483
        %1523 = vmatprep.subr.mxu0 0.0
        %1524 = vmatpush2.msra.mxu0 0.0
        %1525 = vmatprep.subr.mxu0 0.0
        %1526 = vmatpush2.msra.mxu0 0.0
        %1527 = vmatprep.subr.mxu0 0.0
        %1528 = vmatpush2.msra.mxu0 0.0
        %1529 = vmatprep.subr.mxu0 0.0
        %1530 = vmatpush2.msra.mxu0 0.0
        %1531 = vmatprep.subr.mxu0 0.0
        %1532 = vmatpush2.msra.mxu0 0.0
        %1533 = vmatprep.subr.mxu0 0.0
        %1534 = vmatpush2.msra.mxu0 0.0
        %1535 = vmatprep.subr.mxu0 0.0
        %1536 = vmatpush2.msra.mxu0 0.0
        %1537 = vmatprep.subr.mxu0 0.0
        %1538 = vmatpush2.msra.mxu0 0.0
        %1539 = vmatprep.subr.mxu0 0.0
        %1540 = vmatpush2.msra.mxu0 0.0
        %1541 = vmatprep.subr.mxu0 0.0
        %1542 = vmatpush2.msra.mxu0 0.0
        %1543 = vmatprep.subr.mxu0 0.0
        %1544 = vmatpush2.msra.mxu0 0.0
        %1545 = vmatprep.subr.mxu0 0.0
        %1546 = vmatpush2.msra.mxu0 0.0
        %1547 = vmatprep.subr.mxu0 0.0
        %1548 = vmatpush2.msra.mxu0 0.0
        %1549 = vmatprep.subr.mxu0 0.0
        %1550 = vmatpush2.msra.mxu0 0.0
        %1551 = vmatprep.subr.mxu0 0.0
        %1552 = vmatpush2.msra.mxu0 0.0
        %1553 = vmatprep.subr.mxu0 0.0
        %1554 = vmatpush2.msra.mxu0 0.0
        %1555 = vmatprep.mubr.f32.mxu0 0.0
        %1556 = vmatmul.mubr.f32.gmra.mxu0 %v836
        %v1557 = vpop.f32.mrf.mxu0
        %v1558 = vadd.f32 %v468, %v1557
        %v1559 = vpop.f32.mrf.mxu0
        %v1560 = vadd.f32 %v468, %v1559
        %1561 = vdwg.mxu0
        %s1562 = scalar_lea.vmem %s400, 32 [#allocation2]
        %1563 = vst [vmem:[%s1562] sm:$0xff] %v1558
        %1564 = vst [vmem:[%s1562 + $0x8] sm:$0xff] %v1560
        %v1565 = vsel %vm514, %v1558, 0.0
        %v1566 = vrot.slane %v1565, 4
        %v1567 = vadd.f32 %v1565, %v1566
        %v1568 = vrot.slane %v1567, 2
        %v1569 = vadd.f32 %v1567, %v1568
        %v1570 = vrot.slane %v1569, 1
        %v1571 = vadd.f32 %v1569, %v1570
        %v1572 = vsel %vm514, %v1560, 0.0
        %v1573 = vrot.slane %v1572, 4
        %v1574 = vadd.f32 %v1572, %v1573
        %v1575 = vrot.slane %v1574, 2
        %v1576 = vadd.f32 %v1574, %v1575
        %v1577 = vrot.slane %v1576, 1
        %v1578 = vadd.f32 %v1576, %v1577
        %v1581 = vcombine.low %v1571, %v1578
        %v1583 = vunpack.c.l.s4 1966171168
        %v1584 = vunpack.c.0.s8 %v1583
        %v1585 = vlaneseq
        %v1586 = vshrl.u32 %v1585, 7
        %v1587 = vsub.s32 %v1584, %v1586
        %v1588 = vrot.slane %v1581, %v1587
        %v1590 = vunpack.c.l.s4 1966171168
        %v1591 = vunpack.c.0.s8 %v1590
        %v1592 = vlaneseq
        %v1593 = vshrl.u32 %v1592, 7
        %v1594 = vsub.s32 %v1591, %v1593
        %v1595 = vrot.slane %v1588, %v1594
        %v1597 = vlaneseq
        %vm1598 = vcmp.ge.s32.totalorder %v1597, 0
        %vm1599 = vcmp.lt.s32.totalorder %v1597, 256
        %vm1600 = vmand %vm1598, %vm1599
        %1601 = vst.msk [vmem:[%s429] sm:$0x3] %vm1600, %v1595
        %v1602 = vmul.f32 %v1558, 1.442695
        %v1603 = vpow.pop %v1602
        %v1604 = vmul.f32 %v1560, 1.442695
        %v1605 = vpow.pop %v1604
        %v1608 = vrot.slane %v1603, 4
        %v1609 = vrot.slane %v1605, 4
        %v1612 = vmul.f32 %v1289, %v1608
        %v1613 = vmul.f32 %v1290, %v1609
        %v1614 = vadd.f32 %v1612, %v1558
        %v1615 = vadd.f32 %v1613, %v1560
        %v1618 = vrot.slane %v1614, 6
        %v1619 = vrot.slane %v1615, 6
        %v1622 = vrot.slane %v1614, 4
        %v1623 = vrot.slane %v1615, 4
        %v1626 = vrot.slane %v1614, 5
        %v1627 = vrot.slane %v1615, 5
        %v1630 = vrot.slane %v1289, 7
        %v1631 = vrot.slane %v1290, 7
        %v1634 = vrot.slane %v1614, 7
        %v1635 = vrot.slane %v1615, 7
        %v1638 = vrot.slane %v1289, 2
        %v1639 = vrot.slane %v1290, 2
        %v1642 = vsel %vm947, %v1618, %v1622
        %v1643 = vsel %vm947, %v1619, %v1623
        %v1644 = vsel %vm950, %v1642, %v1626
        %v1645 = vsel %vm950, %v1643, %v1627
        %v1646 = vsel %vm953, %v1644, %v1630
        %v1647 = vsel %vm953, %v1645, %v1631
        %v1648 = vsel %vm514, %v1646, %v1630
        %v1649 = vsel %vm514, %v1647, %v1631
        %v1650 = vsel %vm958, %v1648, %v1634
        %v1651 = vsel %vm958, %v1649, %v1635
        %v1652 = vsel %vm961, %v1650, %v1638
        %v1653 = vsel %vm961, %v1651, %v1639
        %v1654 = vsel %vm964, %v1652, %v1638
        %v1655 = vsel %vm964, %v1653, %v1639
        %1656 = vst [vmem:[%s423] sm:$0xff] %v1654
        %1657 = vst [vmem:[%s423 + $0x8] sm:$0xff] %v1655
        %s1658 = smul.u32 2, %s23
        %p1659 = scmp.lt.s32.totalorder %s1658, 3
        %s1660 = scalar_select %p1659, %s1658, 3
        %s1661 = smul.addr %s1660, 8
        %s1662 = scalar_lea.vmem %s9, %s1661
        %s1663 = sand.u32 %s256, 1
        %s1664 = sand.u32 %s256, 1
        %s1665 = smul.addr %s1664, 48
        %s1666 = scalar_lea.vmem [#allocation2], %s1665
        %s1667 = smul.u32 2, %s23
        %p1668 = scmp.lt.s32.totalorder %s1667, 3
        %s1669 = scalar_select %p1668, %s1667, 3
        %s1670 = scalar_lea.vmem %s11, %s1669
        // Predicated region
        $region57: #{_normalizing_flow_forward_impl.1} parent=55 // pred_check
          %p1671 = pneg %p240
        $region58: #{_normalizing_flow_forward_impl.1} parent=55 // pred_check_branch
          %1673 = sbr.rel (%p1671) target = $region60
        $region59: #{_normalizing_flow_forward_impl.1} parent=55 // pred_region
          %s1674 = smul.u32 2, %s23
        $region60: #{_normalizing_flow_forward_impl.1} parent=55 // pred_fallthru
          _
        // Predicated region
        $region61: #{_normalizing_flow_forward_impl.1} parent=55 // pred_check
          %p1675 = pneg %p266
        $region62: #{_normalizing_flow_forward_impl.1} parent=55 // pred_check_branch
          %1677 = sbr.rel (%p1675) target = $region64
        $region63: #{_normalizing_flow_forward_impl.1} parent=55 // pred_region
          %s1678 = smul.u32 2, %s23
          %s1679 = smul.addr %s1678, 8
          %s1680 = scalar_lea.vmem %s10, %s1679
          // Predicated region
          $region65: #{_normalizing_flow_forward_impl.1} parent=63 // pred_check
            _
          $region66: #{_normalizing_flow_forward_impl.1} parent=63 // pred_check_branch
            %1682 = sbr.rel (0) target = $region68
          $region67: #{_normalizing_flow_forward_impl.1} parent=63 // pred_region
            // Predicated region
            $region69: #{_normalizing_flow_forward_impl.1} parent=67 // pred_check
              _
            $region70: #{_normalizing_flow_forward_impl.1} parent=67 // pred_check_branch
              %1684 = sbr.rel (0) target = $region72
            $region71: #{_normalizing_flow_forward_impl.1} parent=67 // pred_region
              loop: start=0, step=1, limit=1
              $region73: #{_normalizing_flow_forward_impl.1} parent=71 // loop_pre_header
                _
              $region74: #{_normalizing_flow_forward_impl.1} parent=71 // loop_header
                %s1686 = sphi 0, %s1690
                %p1687 = scmp.ge.s32.totalorder %s1686, 1
                %s1691 = sphi %s1666, %s1666
                %s1692 = sphi %s1680, %s1680
              $region75: #{_normalizing_flow_forward_impl.1} parent=71 // loop_header_branch
                %1689 = sbr.rel (%p1687) target = $region79
              $region76: #{_normalizing_flow_forward_impl.1} parent=71 // loop_body
                %v1693 = vld [vmem:[%s1691] sm:$0xff]
                %1694 = vst [vmem:[%s1692] sm:$0xff] %v1693
                %v1695 = vld [vmem:[%s1691 + $0x8] sm:$0xff]
                %1696 = vst [vmem:[%s1692 + $0x8] sm:$0xff] %v1695
                %v1697 = vld [vmem:[%s1691 + $0x10] sm:$0xff]
                %1698 = vst [vmem:[%s1692 + $0x20] sm:$0xff] %v1697
                %v1699 = vld [vmem:[%s1691 + $0x18] sm:$0xff]
                %1700 = vst [vmem:[%s1692 + $0x28] sm:$0xff] %v1699
                %v1701 = vld [vmem:[%s1691 + $0x20] sm:$0xff]
                %1702 = vst [vmem:[%s1692 + $0x40] sm:$0xff] %v1701
                %v1703 = vld [vmem:[%s1691 + $0x28] sm:$0xff]
                %1704 = vst [vmem:[%s1692 + $0x48] sm:$0xff] %v1703
              $region77: #{_normalizing_flow_forward_impl.1} parent=71 // loop_footer
                %s1690 = sadd.s32 1, %s1686
              $region78: #{_normalizing_flow_forward_impl.1} parent=71 // loop_footer_branch
                %1685 = sbr.rel target = $region74
              $region79: #{_normalizing_flow_forward_impl.1} parent=71 // loop_exit
                _
            $region72: #{_normalizing_flow_forward_impl.1} parent=67 // pred_fallthru
              _
            // Predicated region
            $region80: #{_normalizing_flow_forward_impl.1} parent=67 // pred_check
              _
            $region81: #{_normalizing_flow_forward_impl.1} parent=67 // pred_check_branch
              %1706 = sbr.rel target = $region83
            $region82: #{_normalizing_flow_forward_impl.1} parent=67 // pred_region
              _
            $region83: #{_normalizing_flow_forward_impl.1} parent=67 // pred_fallthru
              _
          $region68: #{_normalizing_flow_forward_impl.1} parent=63 // pred_fallthru
            _
          %1707 = vnop
        $region64: #{_normalizing_flow_forward_impl.1} parent=55 // pred_fallthru
          _
        // Predicated region
        $region84: #{_normalizing_flow_forward_impl.1} parent=55 // pred_check
          %p1708 = pneg %p292
        $region85: #{_normalizing_flow_forward_impl.1} parent=55 // pred_check_branch
          %1710 = sbr.rel (%p1708) target = $region87
        $region86: #{_normalizing_flow_forward_impl.1} parent=55 // pred_region
          %s1711 = smul.u32 2, %s23
        $region87: #{_normalizing_flow_forward_impl.1} parent=55 // pred_fallthru
          _
      $region56: #{_normalizing_flow_forward_impl.1} parent=5 // pred_fallthru
        _
      %p1712 = scmp.le.s32.totalorder 2, %s18
      // Predicated region
      $region88: #{_normalizing_flow_forward_impl.1} parent=5 // pred_check
        %p1713 = pneg %p1712
      $region89: #{_normalizing_flow_forward_impl.1} parent=5 // pred_check_branch
        %1715 = sbr.rel (%p1713) target = $region91
      $region90: #{_normalizing_flow_forward_impl.1} parent=5 // pred_region
        %s1716 = ssub.s32 %s18, 2
        // Predicated region
        $region92: #{_normalizing_flow_forward_impl.1} parent=90 // pred_check
          %p1717 = pneg %p246
        $region93: #{_normalizing_flow_forward_impl.1} parent=90 // pred_check_branch
          %1719 = sbr.rel (%p1717) target = $region95
        $region94: #{_normalizing_flow_forward_impl.1} parent=90 // pred_region
          %s1720 = smul.u32 2, %s24
          %p1721 = scmp.lt.s32.totalorder %s1720, 3
          %s1722 = scalar_select %p1721, %s1720, 3
          %s1723 = smul.addr %s1722, 8
          %s1724 = scalar_lea.vmem %s9, %s1723
        $region95: #{_normalizing_flow_forward_impl.1} parent=90 // pred_fallthru
          _
        // Predicated region
        $region96: #{_normalizing_flow_forward_impl.1} parent=90 // pred_check
          %p1725 = pneg %p272
        $region97: #{_normalizing_flow_forward_impl.1} parent=90 // pred_check_branch
          %1727 = sbr.rel (%p1725) target = $region99
        $region98: #{_normalizing_flow_forward_impl.1} parent=90 // pred_region
          %s1728 = sand.u32 %s257, 1
          %s1729 = sand.u32 %s257, 1
          %s1730 = smul.addr %s1729, 48
          %s1731 = scalar_lea.vmem [#allocation2], %s1730
        $region99: #{_normalizing_flow_forward_impl.1} parent=90 // pred_fallthru
          _
        // Predicated region
        $region100: #{_normalizing_flow_forward_impl.1} parent=90 // pred_check
          %p1732 = pneg %p298
        $region101: #{_normalizing_flow_forward_impl.1} parent=90 // pred_check_branch
          %1734 = sbr.rel (%p1732) target = $region103
        $region102: #{_normalizing_flow_forward_impl.1} parent=90 // pred_region
          %s1735 = smul.u32 2, %s24
          %p1736 = scmp.lt.s32.totalorder %s1735, 3
          %s1737 = scalar_select %p1736, %s1735, 3
          %s1738 = scalar_lea.vmem %s11, %s1737
        $region103: #{_normalizing_flow_forward_impl.1} parent=90 // pred_fallthru
          _
      $region91: #{_normalizing_flow_forward_impl.1} parent=5 // pred_fallthru
        _
    $region6: #{_normalizing_flow_forward_impl.1} parent=1 // loop_footer
      %s22 = sadd.s32 1, %s18
    $region7: #{_normalizing_flow_forward_impl.1} parent=1 // loop_footer_branch
      %17 = sbr.rel target = $region3
    $region8: #{_normalizing_flow_forward_impl.1} parent=1 // loop_exit
      _

</llo_original>
